<compile_context>
chip_gen: v5e
topology: v5e:2x2
jax: 0.10.0
libtpu: 0.0.40
codegen_flags: <defaults>
</compile_context>

<pallas_src>
import functools
import math

import jax
import jax.numpy as jnp
from jax.experimental import pallas as pl
from jax.experimental.pallas import tpu as pltpu


def edsr_kernel(x_ref, masks_ref, w1t_ref, b1_ref, w2t_ref, b2_ref, out_ref,
                *, width, hw):
    # x_ref   : (nb, C, H*W)   block of images, NCHW flattened over space
    # masks   : (8,  nb*H*W)   f32 0/1 border-validity masks (non-center taps)
    # w1t/w2t : (C, 9*C)       conv weights, tap-major / channel-minor K
    # b1/b2   : (C, 1)         biases (f32)
    # out_ref : (nb, C, H*W)
    nb, cc, _ = x_ref.shape
    npix = nb * hw
    inv_sqrt2 = 0.7071067811865476

    # Fold the batch into the lane axis: (nb, C, HW) -> (C, nb*HW).
    # hw is a multiple of 128 for the intended shapes, so this lane concat is
    # tile-aligned (plain vreg copies, no cross-lane shuffles).
    if nb == 1:
        x = x_ref[0]
    else:
        x = jnp.concatenate([x_ref[b] for b in range(nb)], axis=1)

    # Border masks, one (1, npix) row per non-center tap; converted to bool
    # once per grid step and sublane-broadcast inside the selects.
    mvalid = masks_ref[...] != 0.0

    # The 9 conv taps: output pixel p takes input pixel p + shift, realized
    # as an XLU lane rotation plus a border select (which also zeroes the
    # positions where the rotation wrapped across an image boundary).
    tap_list = []
    j = 0
    for ky in range(3):
        for kx in range(3):
            dy, dx = ky - 1, kx - 1
            if dy == 0 and dx == 0:
                tap_list.append((0, None))
            else:
                tap_list.append((dy * width + dx, j))
                j += 1

    def im2col(v):
        # v: (C, nb*HW) -> (9*C, nb*HW); tap-major / channel-minor along
        # sublanes, matching the (Cout, 9*Cin) weight layout from the wrapper.
        slabs = []
        for shift, mj in tap_list:
            if mj is None:
                slabs.append(v)
            else:
                amt = (-shift) % npix          # static, non-negative
                rolled = pltpu.roll(v, amt, axis=1)
                slabs.append(jnp.where(mvalid[mj:mj + 1], rolled, 0.0))
        return jnp.concatenate(slabs, axis=0)

    w1t = w1t_ref[...]
    w2t = w2t_ref[...]
    b1 = b1_ref[...]
    b2 = b2_ref[...]
    dims = (((1,), (0,)), ((), ()))            # (M,K) x (K,N) contraction

    # conv1 -> bias -> exact-erf GELU (f32) -> conv2 -> bias
    a1 = jax.lax.dot_general(w1t, im2col(x), dims,
                             preferred_element_type=jnp.float32)
    a1 = a1 + b1
    g = 0.5 * a1 * (1.0 + jax.lax.erf(a1 * inv_sqrt2))
    a2 = jax.lax.dot_general(w2t, im2col(g.astype(x.dtype)), dims,
                             preferred_element_type=jnp.float32)
    a2 = a2 + b2

    y = a2.astype(out_ref.dtype)
    for b in range(nb):                        # 128-aligned static lane slices
        out_ref[b] = y[:, b * hw:(b + 1) * hw]


def _pick_batch_block(n, c, hw, itemsize, vmem_budget=24 * 1024 * 1024):
    # Fold as many images per grid step as the VMEM budget allows (fewer,
    # larger steps amortize the ~0.35us/step overhead on single-TC v5e/v6e),
    # but keep >=2 grid steps when the batch permits so both v7x TensorCores
    # get work through dimension_semantics=("parallel",).
    def fits(nb):
        per_img = c * hw
        est = (4 * per_img * itemsize          # in+out blocks, double-buffered
               + 9 * per_img * itemsize        # im2col operand
               + 4 * per_img * 4) * nb         # f32 working set (a1, gelu, a2)
        return est <= vmem_budget

    best = 1
    for nb in range(1, n + 1):
        if n % nb == 0 and n // nb >= 2 and fits(nb):
            best = nb
    return best


def edsr_block(x_nchw, w1, b1, w2, b2, *, batch_block=None):
    """x_nchw: (N, C, H, W); w1, w2: (3, 3, C, C) HWIO; b1, b2: (C,)."""
    n, c, h, w = x_nchw.shape
    p = h * w
    k = 9 * c
    cdt = x_nchw.dtype
    itemsize = jnp.dtype(cdt).itemsize
    nb = _pick_batch_block(n, c, p, itemsize) if batch_block is None \
        else batch_block
    assert n % nb == 0
    npix = nb * p

    x = x_nchw.reshape(n, c, p)                 # NCHW, pixels on lanes

    # (3,3,Cin,Cout) -> (Cout, 9*Cin); kept in the input dtype so a bf16 input
    # path feeds bf16 MXU operands with f32 accumulation.
    w1t = w1.reshape(k, c).T.astype(cdt)
    w2t = w2.reshape(k, c).T.astype(cdt)
    b1r = b1.reshape(c, 1).astype(jnp.float32)
    b2r = b2.reshape(c, 1).astype(jnp.float32)

    # Precomputed border masks for the 8 non-center taps, tiled over the nb
    # images folded into the lane axis (so in-kernel rolls that cross an
    # image boundary are zeroed exactly where 'same' padding requires).
    pix = jnp.arange(p, dtype=jnp.int32)
    h_idx = pix // w
    w_idx = pix % w
    rows = []
    for ky in range(3):
        for kx in range(3):
            dy, dx = ky - 1, kx - 1
            if dy == 0 and dx == 0:
                continue
            valid = ((h_idx + dy >= 0) & (h_idx + dy < h) &
                     (w_idx + dx >= 0) & (w_idx + dx < w))
            rows.append(valid)
    masks = jnp.stack(rows, axis=0).astype(jnp.float32)   # (8, H*W)
    masks = jnp.tile(masks, (1, nb))                       # (8, nb*H*W)

    flops = int(2 * 2 * 9 * c * c * n * h * w)             # two convs
    transcendentals = int(n * c * h * w)                    # one erf / element
    bytes_accessed = int(2 * n * c * p * itemsize           # activations
                         + 2 * k * c * itemsize             # weights
                         + 8 * npix * 4                     # masks
                         + 2 * c * 4)                        # biases

    kern = functools.partial(edsr_kernel, width=w, hw=p)
    out = pl.pallas_call(
        kern,
        out_shape=jax.ShapeDtypeStruct((n, c, p), cdt),
        grid_spec=pltpu.PrefetchScalarGridSpec(
            num_scalar_prefetch=0,
            grid=(n // nb,),
            in_specs=[
                pl.BlockSpec((nb, c, p), lambda i: (i, 0, 0)),
                pl.BlockSpec((8, npix), lambda i: (0, 0)),
                pl.BlockSpec((c, k), lambda i: (0, 0)),
                pl.BlockSpec((c, 1), lambda i: (0, 0)),
                pl.BlockSpec((c, k), lambda i: (0, 0)),
                pl.BlockSpec((c, 1), lambda i: (0, 0)),
            ],
            out_specs=pl.BlockSpec((nb, c, p), lambda i: (i, 0, 0)),
        ),
        compiler_params=pltpu.CompilerParams(
            dimension_semantics=("parallel",),
            vmem_limit_bytes=32 * 1024 * 1024),
        cost_estimate=pl.CostEstimate(
            flops=flops,
            transcendentals=transcendentals,
            bytes_accessed=bytes_accessed),
    )(x, masks, w1t, b1r, w2t, b2r)
    return out.reshape(n, c, h, w)


def edsr_reference(x_nchw, w1, b1, w2, b2):
    """Pure-JAX reference (lax conv, NCHW) for correctness checking."""
    dn = ("NCHW", "HWIO", "NCHW")
    prec = jax.lax.Precision.HIGHEST
    y = jax.lax.conv_general_dilated(x_nchw, w1, (1, 1), "SAME",
                                     dimension_numbers=dn, precision=prec)
    y = y + b1.reshape(1, -1, 1, 1)
    y = 0.5 * y * (1.0 + jax.lax.erf(y / jnp.sqrt(2.0)))
    y = jax.lax.conv_general_dilated(y, w2, (1, 1), "SAME",
                                     dimension_numbers=dn, precision=prec)
    y = y + b2.reshape(1, -1, 1, 1)
    return y


if __name__ == "__main__":
    N, C, H, W = 2, 8, 16, 16

    key = jax.random.PRNGKey(0)
    kx, kw1, kb1, kw2, kb2 = jax.random.split(key, 5)

    # Deterministic init mimicking PyTorch Conv2d default bounds.
    fan_in = C * 3 * 3
    bound = 1.0 / math.sqrt(fan_in)
    x = jax.random.normal(kx, (N, C, H, W), dtype=jnp.float32)
    w1 = jax.random.uniform(kw1, (3, 3, C, C), jnp.float32, -bound, bound)
    b1 = jax.random.uniform(kb1, (C,), jnp.float32, -bound, bound)
    w2 = jax.random.uniform(kw2, (3, 3, C, C), jnp.float32, -bound, bound)
    b2 = jax.random.uniform(kb2, (C,), jnp.float32, -bound, bound)

    out = jax.block_until_ready(edsr_block(x, w1, b1, w2, b2))
    ref = jax.block_until_ready(edsr_reference(x, w1, b1, w2, b2))

    assert out.shape == (N, C, H, W), out.shape
    max_err = jnp.max(jnp.abs(out - ref))
    assert jnp.allclose(out, ref, atol=2e-4, rtol=2e-4), \
        f"max abs err = {max_err}"

    print("KERNEL_OK")
</pallas_src>

<mosaic_0001>
module attributes {stable_mosaic.version = 11 : i64} {
  func.func @edsr_kernel(%arg0: i32, %arg1: memref<1x8x256xf32, #tpu.memory_space<vmem>>, %arg2: memref<8x256xf32, #tpu.memory_space<vmem>>, %arg3: memref<8x72xf32, #tpu.memory_space<vmem>>, %arg4: memref<8x1xf32, #tpu.memory_space<vmem>>, %arg5: memref<8x72xf32, #tpu.memory_space<vmem>>, %arg6: memref<8x1xf32, #tpu.memory_space<vmem>>, %arg7: memref<1x8x256xf32, #tpu.memory_space<vmem>>) attributes {dimension_semantics = [#tpu.dimension_semantics<parallel>], iteration_bounds = array<i64: 2>, scalar_prefetch = 0 : i64, scratch_operands = 0 : i64, tpu.core_type = #tpu.core_type<tc>, window_params = [{transform_indices = @transform_0, window_bounds = array<i64: 1, 8, 256>}, {pipeline_mode = #tpu.pipeline_mode<synchronous>, transform_indices = @transform_1, window_bounds = array<i64: 8, 256>}, {pipeline_mode = #tpu.pipeline_mode<synchronous>, transform_indices = @transform_2, window_bounds = array<i64: 8, 72>}, {pipeline_mode = #tpu.pipeline_mode<synchronous>, transform_indices = @transform_3, window_bounds = array<i64: 8, 1>}, {pipeline_mode = #tpu.pipeline_mode<synchronous>, transform_indices = @transform_4, window_bounds = array<i64: 8, 72>}, {pipeline_mode = #tpu.pipeline_mode<synchronous>, transform_indices = @transform_5, window_bounds = array<i64: 8, 1>}, {transform_indices = @transform_6, window_bounds = array<i64: 1, 8, 256>}]} {
    %c0 = arith.constant 0 : index
    %c0_0 = arith.constant 0 : index
    %c0_1 = arith.constant 0 : index
    %0 = vector.load %arg1[%c0, %c0_0, %c0_1] : memref<1x8x256xf32, #tpu.memory_space<vmem>>, vector<1x8x256xf32>
    %1 = vector.shape_cast %0 : vector<1x8x256xf32> to vector<8x256xf32>
    %c0_2 = arith.constant 0 : index
    %c0_3 = arith.constant 0 : index
    %2 = vector.load %arg2[%c0_2, %c0_3] : memref<8x256xf32, #tpu.memory_space<vmem>>, vector<8x256xf32>
    %cst = arith.constant 0.000000e+00 : f32
    %3 = vector.broadcast %cst : f32 to vector<8x256xf32>
    %4 = arith.cmpf one, %2, %3 : vector<8x256xf32>
    %c0_4 = arith.constant 0 : index
    %c0_5 = arith.constant 0 : index
    %5 = vector.load %arg3[%c0_4, %c0_5] : memref<8x72xf32, #tpu.memory_space<vmem>>, vector<8x72xf32>
    %c0_6 = arith.constant 0 : index
    %c0_7 = arith.constant 0 : index
    %6 = vector.load %arg5[%c0_6, %c0_7] : memref<8x72xf32, #tpu.memory_space<vmem>>, vector<8x72xf32>
    %c0_8 = arith.constant 0 : index
    %c0_9 = arith.constant 0 : index
    %7 = vector.load %arg4[%c0_8, %c0_9] : memref<8x1xf32, #tpu.memory_space<vmem>>, vector<8x1xf32>
    %c0_10 = arith.constant 0 : index
    %c0_11 = arith.constant 0 : index
    %8 = vector.load %arg6[%c0_10, %c0_11] : memref<8x1xf32, #tpu.memory_space<vmem>>, vector<8x1xf32>
    %c17_i32 = arith.constant 17 : i32
    %9 = tpu.dynamic_rotate %1 by %c17_i32 dim 1 : vector<8x256xf32>, i32 -> vector<8x256xf32>
    %10 = vector.extract_strided_slice %4 {offsets = [0, 0], sizes = [1, 256], strides = [1, 1]} : vector<8x256xi1> to vector<1x256xi1>
    %cst_12 = arith.constant 0.000000e+00 : f32
    %11 = vector.shape_cast %10 : vector<1x256xi1> to vector<1x256xi1>
    %12 = vector.broadcast %11 : vector<1x256xi1> to vector<8x256xi1>
    %13 = vector.broadcast %cst_12 : f32 to vector<8x256xf32>
    %14 = arith.select %12, %9, %13 : vector<8x256xi1>, vector<8x256xf32>
    %c16_i32 = arith.constant 16 : i32
    %15 = tpu.dynamic_rotate %1 by %c16_i32 dim 1 : vector<8x256xf32>, i32 -> vector<8x256xf32>
    %16 = vector.extract_strided_slice %4 {offsets = [1, 0], sizes = [1, 256], strides = [1, 1]} : vector<8x256xi1> to vector<1x256xi1>
    %cst_13 = arith.constant 0.000000e+00 : f32
    %17 = vector.shape_cast %16 : vector<1x256xi1> to vector<1x256xi1>
    %18 = vector.broadcast %17 : vector<1x256xi1> to vector<8x256xi1>
    %19 = vector.broadcast %cst_13 : f32 to vector<8x256xf32>
    %20 = arith.select %18, %15, %19 : vector<8x256xi1>, vector<8x256xf32>
    %c15_i32 = arith.constant 15 : i32
    %21 = tpu.dynamic_rotate %1 by %c15_i32 dim 1 : vector<8x256xf32>, i32 -> vector<8x256xf32>
    %22 = vector.extract_strided_slice %4 {offsets = [2, 0], sizes = [1, 256], strides = [1, 1]} : vector<8x256xi1> to vector<1x256xi1>
    %cst_14 = arith.constant 0.000000e+00 : f32
    %23 = vector.shape_cast %22 : vector<1x256xi1> to vector<1x256xi1>
    %24 = vector.broadcast %23 : vector<1x256xi1> to vector<8x256xi1>
    %25 = vector.broadcast %cst_14 : f32 to vector<8x256xf32>
    %26 = arith.select %24, %21, %25 : vector<8x256xi1>, vector<8x256xf32>
    %c1_i32 = arith.constant 1 : i32
    %27 = tpu.dynamic_rotate %1 by %c1_i32 dim 1 : vector<8x256xf32>, i32 -> vector<8x256xf32>
    %28 = vector.extract_strided_slice %4 {offsets = [3, 0], sizes = [1, 256], strides = [1, 1]} : vector<8x256xi1> to vector<1x256xi1>
    %cst_15 = arith.constant 0.000000e+00 : f32
    %29 = vector.shape_cast %28 : vector<1x256xi1> to vector<1x256xi1>
    %30 = vector.broadcast %29 : vector<1x256xi1> to vector<8x256xi1>
    %31 = vector.broadcast %cst_15 : f32 to vector<8x256xf32>
    %32 = arith.select %30, %27, %31 : vector<8x256xi1>, vector<8x256xf32>
    %c255_i32 = arith.constant 255 : i32
    %33 = tpu.dynamic_rotate %1 by %c255_i32 dim 1 : vector<8x256xf32>, i32 -> vector<8x256xf32>
    %34 = vector.extract_strided_slice %4 {offsets = [4, 0], sizes = [1, 256], strides = [1, 1]} : vector<8x256xi1> to vector<1x256xi1>
    %cst_16 = arith.constant 0.000000e+00 : f32
    %35 = vector.shape_cast %34 : vector<1x256xi1> to vector<1x256xi1>
    %36 = vector.broadcast %35 : vector<1x256xi1> to vector<8x256xi1>
    %37 = vector.broadcast %cst_16 : f32 to vector<8x256xf32>
    %38 = arith.select %36, %33, %37 : vector<8x256xi1>, vector<8x256xf32>
    %c241_i32 = arith.constant 241 : i32
    %39 = tpu.dynamic_rotate %1 by %c241_i32 dim 1 : vector<8x256xf32>, i32 -> vector<8x256xf32>
    %40 = vector.extract_strided_slice %4 {offsets = [5, 0], sizes = [1, 256], strides = [1, 1]} : vector<8x256xi1> to vector<1x256xi1>
    %cst_17 = arith.constant 0.000000e+00 : f32
    %41 = vector.shape_cast %40 : vector<1x256xi1> to vector<1x256xi1>
    %42 = vector.broadcast %41 : vector<1x256xi1> to vector<8x256xi1>
    %43 = vector.broadcast %cst_17 : f32 to vector<8x256xf32>
    %44 = arith.select %42, %39, %43 : vector<8x256xi1>, vector<8x256xf32>
    %c240_i32 = arith.constant 240 : i32
    %45 = tpu.dynamic_rotate %1 by %c240_i32 dim 1 : vector<8x256xf32>, i32 -> vector<8x256xf32>
    %46 = vector.extract_strided_slice %4 {offsets = [6, 0], sizes = [1, 256], strides = [1, 1]} : vector<8x256xi1> to vector<1x256xi1>
    %cst_18 = arith.constant 0.000000e+00 : f32
    %47 = vector.shape_cast %46 : vector<1x256xi1> to vector<1x256xi1>
    %48 = vector.broadcast %47 : vector<1x256xi1> to vector<8x256xi1>
    %49 = vector.broadcast %cst_18 : f32 to vector<8x256xf32>
    %50 = arith.select %48, %45, %49 : vector<8x256xi1>, vector<8x256xf32>
    %c239_i32 = arith.constant 239 : i32
    %51 = tpu.dynamic_rotate %1 by %c239_i32 dim 1 : vector<8x256xf32>, i32 -> vector<8x256xf32>
    %52 = vector.extract_strided_slice %4 {offsets = [7, 0], sizes = [1, 256], strides = [1, 1]} : vector<8x256xi1> to vector<1x256xi1>
    %cst_19 = arith.constant 0.000000e+00 : f32
    %53 = vector.shape_cast %52 : vector<1x256xi1> to vector<1x256xi1>
    %54 = vector.broadcast %53 : vector<1x256xi1> to vector<8x256xi1>
    %55 = vector.broadcast %cst_19 : f32 to vector<8x256xf32>
    %56 = arith.select %54, %51, %55 : vector<8x256xi1>, vector<8x256xf32>
    %57 = tpu.concatenate %14, %20, %26, %32, %1, %38, %44, %50, %56 in 0 : vector<8x256xf32>, vector<8x256xf32>, vector<8x256xf32>, vector<8x256xf32>, vector<8x256xf32>, vector<8x256xf32>, vector<8x256xf32>, vector<8x256xf32>, vector<8x256xf32> -> vector<72x256xf32>
    %cst_20 = arith.constant dense<0.000000e+00> : vector<8x256xf32>
    %58 = tpu.matmul %5, %57, %cst_20 {dimension_numbers = #tpu.dot_dimension_numbers<[1], [0], [0], [1], [0, 0, 1, 1], [], []>} : vector<8x72xf32>, vector<72x256xf32>, vector<8x256xf32> -> vector<8x256xf32>
    %59 = vector.broadcast %7 : vector<8x1xf32> to vector<8x256xf32>
    %60 = arith.addf %58, %59 : vector<8x256xf32>
    %cst_21 = arith.constant 5.000000e-01 : f32
    %61 = vector.broadcast %cst_21 : f32 to vector<8x256xf32>
    %62 = arith.mulf %61, %60 : vector<8x256xf32>
    %cst_22 = arith.constant 0.707106769 : f32
    %63 = vector.broadcast %cst_22 : f32 to vector<8x256xf32>
    %64 = arith.mulf %60, %63 : vector<8x256xf32>
    %65 = math.erf %64 : vector<8x256xf32>
    %cst_23 = arith.constant 1.000000e+00 : f32
    %66 = vector.broadcast %cst_23 : f32 to vector<8x256xf32>
    %67 = arith.addf %66, %65 : vector<8x256xf32>
    %68 = arith.mulf %62, %67 : vector<8x256xf32>
    %c17_i32_24 = arith.constant 17 : i32
    %69 = tpu.dynamic_rotate %68 by %c17_i32_24 dim 1 : vector<8x256xf32>, i32 -> vector<8x256xf32>
    %70 = vector.extract_strided_slice %4 {offsets = [0, 0], sizes = [1, 256], strides = [1, 1]} : vector<8x256xi1> to vector<1x256xi1>
    %cst_25 = arith.constant 0.000000e+00 : f32
    %71 = vector.shape_cast %70 : vector<1x256xi1> to vector<1x256xi1>
    %72 = vector.broadcast %71 : vector<1x256xi1> to vector<8x256xi1>
    %73 = vector.broadcast %cst_25 : f32 to vector<8x256xf32>
    %74 = arith.select %72, %69, %73 : vector<8x256xi1>, vector<8x256xf32>
    %c16_i32_26 = arith.constant 16 : i32
    %75 = tpu.dynamic_rotate %68 by %c16_i32_26 dim 1 : vector<8x256xf32>, i32 -> vector<8x256xf32>
    %76 = vector.extract_strided_slice %4 {offsets = [1, 0], sizes = [1, 256], strides = [1, 1]} : vector<8x256xi1> to vector<1x256xi1>
    %cst_27 = arith.constant 0.000000e+00 : f32
    %77 = vector.shape_cast %76 : vector<1x256xi1> to vector<1x256xi1>
    %78 = vector.broadcast %77 : vector<1x256xi1> to vector<8x256xi1>
    %79 = vector.broadcast %cst_27 : f32 to vector<8x256xf32>
    %80 = arith.select %78, %75, %79 : vector<8x256xi1>, vector<8x256xf32>
    %c15_i32_28 = arith.constant 15 : i32
    %81 = tpu.dynamic_rotate %68 by %c15_i32_28 dim 1 : vector<8x256xf32>, i32 -> vector<8x256xf32>
    %82 = vector.extract_strided_slice %4 {offsets = [2, 0], sizes = [1, 256], strides = [1, 1]} : vector<8x256xi1> to vector<1x256xi1>
    %cst_29 = arith.constant 0.000000e+00 : f32
    %83 = vector.shape_cast %82 : vector<1x256xi1> to vector<1x256xi1>
    %84 = vector.broadcast %83 : vector<1x256xi1> to vector<8x256xi1>
    %85 = vector.broadcast %cst_29 : f32 to vector<8x256xf32>
    %86 = arith.select %84, %81, %85 : vector<8x256xi1>, vector<8x256xf32>
    %c1_i32_30 = arith.constant 1 : i32
    %87 = tpu.dynamic_rotate %68 by %c1_i32_30 dim 1 : vector<8x256xf32>, i32 -> vector<8x256xf32>
    %88 = vector.extract_strided_slice %4 {offsets = [3, 0], sizes = [1, 256], strides = [1, 1]} : vector<8x256xi1> to vector<1x256xi1>
    %cst_31 = arith.constant 0.000000e+00 : f32
    %89 = vector.shape_cast %88 : vector<1x256xi1> to vector<1x256xi1>
    %90 = vector.broadcast %89 : vector<1x256xi1> to vector<8x256xi1>
    %91 = vector.broadcast %cst_31 : f32 to vector<8x256xf32>
    %92 = arith.select %90, %87, %91 : vector<8x256xi1>, vector<8x256xf32>
    %c255_i32_32 = arith.constant 255 : i32
    %93 = tpu.dynamic_rotate %68 by %c255_i32_32 dim 1 : vector<8x256xf32>, i32 -> vector<8x256xf32>
    %94 = vector.extract_strided_slice %4 {offsets = [4, 0], sizes = [1, 256], strides = [1, 1]} : vector<8x256xi1> to vector<1x256xi1>
    %cst_33 = arith.constant 0.000000e+00 : f32
    %95 = vector.shape_cast %94 : vector<1x256xi1> to vector<1x256xi1>
    %96 = vector.broadcast %95 : vector<1x256xi1> to vector<8x256xi1>
    %97 = vector.broadcast %cst_33 : f32 to vector<8x256xf32>
    %98 = arith.select %96, %93, %97 : vector<8x256xi1>, vector<8x256xf32>
    %c241_i32_34 = arith.constant 241 : i32
    %99 = tpu.dynamic_rotate %68 by %c241_i32_34 dim 1 : vector<8x256xf32>, i32 -> vector<8x256xf32>
    %100 = vector.extract_strided_slice %4 {offsets = [5, 0], sizes = [1, 256], strides = [1, 1]} : vector<8x256xi1> to vector<1x256xi1>
    %cst_35 = arith.constant 0.000000e+00 : f32
    %101 = vector.shape_cast %100 : vector<1x256xi1> to vector<1x256xi1>
    %102 = vector.broadcast %101 : vector<1x256xi1> to vector<8x256xi1>
    %103 = vector.broadcast %cst_35 : f32 to vector<8x256xf32>
    %104 = arith.select %102, %99, %103 : vector<8x256xi1>, vector<8x256xf32>
    %c240_i32_36 = arith.constant 240 : i32
    %105 = tpu.dynamic_rotate %68 by %c240_i32_36 dim 1 : vector<8x256xf32>, i32 -> vector<8x256xf32>
    %106 = vector.extract_strided_slice %4 {offsets = [6, 0], sizes = [1, 256], strides = [1, 1]} : vector<8x256xi1> to vector<1x256xi1>
    %cst_37 = arith.constant 0.000000e+00 : f32
    %107 = vector.shape_cast %106 : vector<1x256xi1> to vector<1x256xi1>
    %108 = vector.broadcast %107 : vector<1x256xi1> to vector<8x256xi1>
    %109 = vector.broadcast %cst_37 : f32 to vector<8x256xf32>
    %110 = arith.select %108, %105, %109 : vector<8x256xi1>, vector<8x256xf32>
    %c239_i32_38 = arith.constant 239 : i32
    %111 = tpu.dynamic_rotate %68 by %c239_i32_38 dim 1 : vector<8x256xf32>, i32 -> vector<8x256xf32>
    %112 = vector.extract_strided_slice %4 {offsets = [7, 0], sizes = [1, 256], strides = [1, 1]} : vector<8x256xi1> to vector<1x256xi1>
    %cst_39 = arith.constant 0.000000e+00 : f32
    %113 = vector.shape_cast %112 : vector<1x256xi1> to vector<1x256xi1>
    %114 = vector.broadcast %113 : vector<1x256xi1> to vector<8x256xi1>
    %115 = vector.broadcast %cst_39 : f32 to vector<8x256xf32>
    %116 = arith.select %114, %111, %115 : vector<8x256xi1>, vector<8x256xf32>
    %117 = tpu.concatenate %74, %80, %86, %92, %68, %98, %104, %110, %116 in 0 : vector<8x256xf32>, vector<8x256xf32>, vector<8x256xf32>, vector<8x256xf32>, vector<8x256xf32>, vector<8x256xf32>, vector<8x256xf32>, vector<8x256xf32>, vector<8x256xf32> -> vector<72x256xf32>
    %cst_40 = arith.constant dense<0.000000e+00> : vector<8x256xf32>
    %118 = tpu.matmul %6, %117, %cst_40 {dimension_numbers = #tpu.dot_dimension_numbers<[1], [0], [0], [1], [0, 0, 1, 1], [], []>} : vector<8x72xf32>, vector<72x256xf32>, vector<8x256xf32> -> vector<8x256xf32>
    %119 = vector.broadcast %8 : vector<8x1xf32> to vector<8x256xf32>
    %120 = arith.addf %118, %119 : vector<8x256xf32>
    %c0_41 = arith.constant 0 : index
    %c0_42 = arith.constant 0 : index
    %c0_43 = arith.constant 0 : index
    %121 = vector.load %arg7[%c0_41, %c0_42, %c0_43] : memref<1x8x256xf32, #tpu.memory_space<vmem>>, vector<1x8x256xf32>
    %122 = vector.shape_cast %121 : vector<1x8x256xf32> to vector<8x256xf32>
    %123 = vector.shape_cast %120 : vector<8x256xf32> to vector<1x8x256xf32>
    tpu.vector_store %arg7[%c0_41, %c0_42, %c0_43], %123 {strides = array<i32>} : memref<1x8x256xf32, #tpu.memory_space<vmem>>, vector<1x8x256xf32>,
    return
  }
  func.func @transform_0(%arg0: i32) -> (i32, i32, i32) {
    %c0_i32 = arith.constant 0 : i32
    %c0_i32_0 = arith.constant 0 : i32
    %c0_i32_1 = arith.constant 0 : i32
    return %arg0, %c0_i32, %c0_i32_0 : i32, i32, i32
  }
  func.func @transform_1(%arg0: i32) -> (i32, i32) {
    %c0_i32 = arith.constant 0 : i32
    %c0_i32_0 = arith.constant 0 : i32
    %c0_i32_1 = arith.constant 0 : i32
    return %c0_i32, %c0_i32_0 : i32, i32
  }
  func.func @transform_2(%arg0: i32) -> (i32, i32) {
    %c0_i32 = arith.constant 0 : i32
    %c0_i32_0 = arith.constant 0 : i32
    %c0_i32_1 = arith.constant 0 : i32
    return %c0_i32, %c0_i32_0 : i32, i32
  }
  func.func @transform_3(%arg0: i32) -> (i32, i32) {
    %c0_i32 = arith.constant 0 : i32
    %c0_i32_0 = arith.constant 0 : i32
    %c0_i32_1 = arith.constant 0 : i32
    return %c0_i32, %c0_i32_0 : i32, i32
  }
  func.func @transform_4(%arg0: i32) -> (i32, i32) {
    %c0_i32 = arith.constant 0 : i32
    %c0_i32_0 = arith.constant 0 : i32
    %c0_i32_1 = arith.constant 0 : i32
    return %c0_i32, %c0_i32_0 : i32, i32
  }
  func.func @transform_5(%arg0: i32) -> (i32, i32) {
    %c0_i32 = arith.constant 0 : i32
    %c0_i32_0 = arith.constant 0 : i32
    %c0_i32_1 = arith.constant 0 : i32
    return %c0_i32, %c0_i32_0 : i32, i32
  }
  func.func @transform_6(%arg0: i32) -> (i32, i32, i32) {
    %c0_i32 = arith.constant 0 : i32
    %c0_i32_0 = arith.constant 0 : i32
    %c0_i32_1 = arith.constant 0 : i32
    return %arg0, %c0_i32, %c0_i32_0 : i32, i32, i32
  }
}

</mosaic_0001>

<llo_original>
// kernel: tpu_custom_call.1
$region0: #{tpu_custom_call.1}
  #allocation0 [shape = 'u32[]', space=smem, size = 0x4, offset = 0x4, fixed_abs, tag = 'smem constant byte address 0x4 - core index']
  #allocation1 [shape = 'u32[72,128]{1,0:T(1,128)}', space=vmem, size = 0x9000, scoped, tag = 'internal scratch']
  %s0 = inlined_call_operand.hbm [shape: f32[2,8,256], index: 0, kind: input, shape index: {}]
  %s1 = inlined_call_operand.vmem [shape: f32[8,256], index: 1, kind: input, shape index: {}]
  %s2 = inlined_call_operand.hbm [shape: f32[8,72], index: 2, kind: input, shape index: {}]
  %s3 = inlined_call_operand.vmem [shape: f32[8,1], index: 3, kind: input, shape index: {}]
  %s4 = inlined_call_operand.hbm [shape: f32[8,72], index: 4, kind: input, shape index: {}]
  %s5 = inlined_call_operand.vmem [shape: f32[8,1], index: 5, kind: input, shape index: {}]
  %s6 = inlined_call_operand.hbm [shape: f32[2,8,256], index: 6, kind: output, shape index: {}]
  %s7 = sld [smem:[#allocation0]]
  $region69: #{tpu_custom_call.1} parent=0
    _
  %s9 = ssub.s32 1, %s7
  %s10 = scalar_select 0, %s9, %s7
  $region1: #{tpu_custom_call.1} parent=0
    #allocation2 [shape = 'u8[16384]{0}', space=vmem, size = 0x4000, scoped, tag = 'input window, operand 0']
    #allocation3 [shape = 's32[2]{0}', space=sflag, size = 0x8, scoped, tag = 'scoped memory for tpu_custom_call.1']
    #allocation4 [shape = 's32[2]{0}', space=sflag, size = 0x8, scoped, tag = 'scoped memory for tpu_custom_call.1']
    #allocation5 [shape = 'u8[4096]{0}', space=vmem, size = 0x1000, scoped, tag = 'input window, operand 2, single buffered']
    #allocation6 [shape = 's32[1]{0}', space=sflag, size = 0x4, scoped, tag = 'scoped memory for tpu_custom_call.1']
    #allocation7 [shape = 'u8[4096]{0}', space=vmem, size = 0x1000, scoped, tag = 'input window, operand 4, single buffered']
    #allocation8 [shape = 'u8[16384]{0}', space=vmem, size = 0x4000, scoped, tag = 'output window, operand 0']
    %11 = vsyncpa [#allocation3], 0
    %s12 = scalar_lea.sflag [#allocation3], 1
    %13 = vsyncpa %s12, 0
    %14 = vsyncpa [#allocation6], 0
    %15 = vsyncpa [#allocation4], 0
    %s16 = scalar_lea.sflag [#allocation4], 1
    %17 = vsyncpa %s16, 0
    loop: start=0, step=1, limit=4
    $region2: #{tpu_custom_call.1} parent=1 // loop_pre_header
      _
    $region3: #{tpu_custom_call.1} parent=1 // loop_header
      %s19 = sphi 0, %s23
      %p20 = scmp.ge.s32.totalorder %s19, 4
      %s29 = sphi 0, %s31
      %s32 = sphi 0, %s29
      %s33 = sphi 0, %s32
      %s49 = sphi 0, %s33
      %s53 = sphi 0, %s53
      %s55 = sphi 0, %s53
      %s56 = sphi 0, %s55
      %s70 = sphi 0, %s56
      %s74 = sphi 0, %s74
      %s76 = sphi 0, %s74
      %s77 = sphi 0, %s76
      %s91 = sphi 0, %s77
      %s95 = sphi 0, %s95
      %s97 = sphi 0, %s95
      %s98 = sphi 0, %s97
      %s112 = sphi 0, %s98
      %s116 = sphi 0, %s116
      %s118 = sphi 0, %s116
      %s119 = sphi 0, %s118
      %s133 = sphi 0, %s119
      %s137 = sphi 0, %s137
      %s139 = sphi 0, %s137
      %s140 = sphi 0, %s139
      %s154 = sphi 0, %s140
      %s160 = sphi 0, %s162
      %s163 = sphi 0, %s160
      %s164 = sphi 0, %s163
      %s180 = sphi 0, %s164
    $region4: #{tpu_custom_call.1} parent=1 // loop_header_branch
      %22 = sbr.rel (%p20) target = $region8
    $region5: #{tpu_custom_call.1} parent=1 // loop_body
      %s24 = ssub.s32 %s19, 1
      %s25 = ssub.s32 %s19, 2
      %s26 = sadd.s32 %s19, 1
      %s27 = ssub.s32 %s19, %s26
      %p28 = scmp.eq.s32.totalorder %s27, 0
      %s30 = sadd.s32 %s29, 1
      %s31 = scalar_select %p28, %s29, %s30
      %p34 = pneg %p28
      %p35 = scmp.eq.s32.totalorder %s19, 1
      %p36 = por %p34, %p35
      %p37 = scmp.ne.s32.totalorder %s29, %s32
      %p38 = scmp.eq.s32.totalorder %s19, 0
      %p39 = por %p37, %p38
      %p40 = scmp.ne.s32.totalorder %s29, %s32
      %p41 = scmp.eq.s32.totalorder %s24, 1
      %p42 = por %p40, %p41
      %p43 = scmp.ne.s32.totalorder %s32, %s33
      %p44 = scmp.eq.s32.totalorder %s24, 0
      %p45 = por %p43, %p44
      %p46 = scmp.ne.s32.totalorder %s32, %s33
      %p47 = scmp.eq.s32.totalorder %s25, 1
      %p48 = por %p46, %p47
      %p50 = scmp.ne.s32.totalorder %s33, %s49
      %p51 = scmp.eq.s32.totalorder %s25, 0
      %p52 = por %p50, %p51
      %s54 = sadd.s32 %s53, 1
      %p57 = scmp.eq.s32.totalorder %s19, 1
      %p58 = scmp.ne.s32.totalorder %s53, %s55
      %p59 = scmp.eq.s32.totalorder %s19, 0
      %p60 = por %p58, %p59
      %p61 = scmp.ne.s32.totalorder %s53, %s55
      %p62 = scmp.eq.s32.totalorder %s24, 1
      %p63 = por %p61, %p62
      %p64 = scmp.ne.s32.totalorder %s55, %s56
      %p65 = scmp.eq.s32.totalorder %s24, 0
      %p66 = por %p64, %p65
      %p67 = scmp.ne.s32.totalorder %s55, %s56
      %p68 = scmp.eq.s32.totalorder %s25, 1
      %p69 = por %p67, %p68
      %p71 = scmp.ne.s32.totalorder %s56, %s70
      %p72 = scmp.eq.s32.totalorder %s25, 0
      %p73 = por %p71, %p72
      %s75 = sadd.s32 %s74, 1
      %p78 = scmp.eq.s32.totalorder %s19, 1
      %p79 = scmp.ne.s32.totalorder %s74, %s76
      %p80 = scmp.eq.s32.totalorder %s19, 0
      %p81 = por %p79, %p80
      %p82 = scmp.ne.s32.totalorder %s74, %s76
      %p83 = scmp.eq.s32.totalorder %s24, 1
      %p84 = por %p82, %p83
      %p85 = scmp.ne.s32.totalorder %s76, %s77
      %p86 = scmp.eq.s32.totalorder %s24, 0
      %p87 = por %p85, %p86
      %p88 = scmp.ne.s32.totalorder %s76, %s77
      %p89 = scmp.eq.s32.totalorder %s25, 1
      %p90 = por %p88, %p89
      %p92 = scmp.ne.s32.totalorder %s77, %s91
      %p93 = scmp.eq.s32.totalorder %s25, 0
      %p94 = por %p92, %p93
      %s96 = sadd.s32 %s95, 1
      %p99 = scmp.eq.s32.totalorder %s19, 1
      %p100 = scmp.ne.s32.totalorder %s95, %s97
      %p101 = scmp.eq.s32.totalorder %s19, 0
      %p102 = por %p100, %p101
      %p103 = scmp.ne.s32.totalorder %s95, %s97
      %p104 = scmp.eq.s32.totalorder %s24, 1
      %p105 = por %p103, %p104
      %p106 = scmp.ne.s32.totalorder %s97, %s98
      %p107 = scmp.eq.s32.totalorder %s24, 0
      %p108 = por %p106, %p107
      %p109 = scmp.ne.s32.totalorder %s97, %s98
      %p110 = scmp.eq.s32.totalorder %s25, 1
      %p111 = por %p109, %p110
      %p113 = scmp.ne.s32.totalorder %s98, %s112
      %p114 = scmp.eq.s32.totalorder %s25, 0
      %p115 = por %p113, %p114
      %s117 = sadd.s32 %s116, 1
      %p120 = scmp.eq.s32.totalorder %s19, 1
      %p121 = scmp.ne.s32.totalorder %s116, %s118
      %p122 = scmp.eq.s32.totalorder %s19, 0
      %p123 = por %p121, %p122
      %p124 = scmp.ne.s32.totalorder %s116, %s118
      %p125 = scmp.eq.s32.totalorder %s24, 1
      %p126 = por %p124, %p125
      %p127 = scmp.ne.s32.totalorder %s118, %s119
      %p128 = scmp.eq.s32.totalorder %s24, 0
      %p129 = por %p127, %p128
      %p130 = scmp.ne.s32.totalorder %s118, %s119
      %p131 = scmp.eq.s32.totalorder %s25, 1
      %p132 = por %p130, %p131
      %p134 = scmp.ne.s32.totalorder %s119, %s133
      %p135 = scmp.eq.s32.totalorder %s25, 0
      %p136 = por %p134, %p135
      %s138 = sadd.s32 %s137, 1
      %p141 = scmp.eq.s32.totalorder %s19, 1
      %p142 = scmp.ne.s32.totalorder %s137, %s139
      %p143 = scmp.eq.s32.totalorder %s19, 0
      %p144 = por %p142, %p143
      %p145 = scmp.ne.s32.totalorder %s137, %s139
      %p146 = scmp.eq.s32.totalorder %s24, 1
      %p147 = por %p145, %p146
      %p148 = scmp.ne.s32.totalorder %s139, %s140
      %p149 = scmp.eq.s32.totalorder %s24, 0
      %p150 = por %p148, %p149
      %p151 = scmp.ne.s32.totalorder %s139, %s140
      %p152 = scmp.eq.s32.totalorder %s25, 1
      %p153 = por %p151, %p152
      %p155 = scmp.ne.s32.totalorder %s140, %s154
      %p156 = scmp.eq.s32.totalorder %s25, 0
      %p157 = por %p155, %p156
      %s158 = ssub.s32 %s19, %s26
      %p159 = scmp.eq.s32.totalorder %s158, 0
      %s161 = sadd.s32 %s160, 1
      %s162 = scalar_select %p159, %s160, %s161
      %p165 = pneg %p159
      %p166 = scmp.eq.s32.totalorder %s19, 1
      %p167 = por %p165, %p166
      %p168 = scmp.ne.s32.totalorder %s160, %s163
      %p169 = scmp.eq.s32.totalorder %s19, 0
      %p170 = por %p168, %p169
      %p171 = scmp.ne.s32.totalorder %s160, %s163
      %p172 = scmp.eq.s32.totalorder %s24, 1
      %p173 = por %p171, %p172
      %p174 = scmp.ne.s32.totalorder %s163, %s164
      %p175 = scmp.eq.s32.totalorder %s24, 0
      %p176 = por %p174, %p175
      %p177 = scmp.ne.s32.totalorder %s163, %s164
      %p178 = scmp.eq.s32.totalorder %s25, 1
      %p179 = por %p177, %p178
      %p181 = scmp.ne.s32.totalorder %s164, %s180
      %p182 = scmp.eq.s32.totalorder %s25, 0
      %p183 = por %p181, %p182
      %p184 = scmp.le.s32.totalorder 1, %s19
      %p185 = scmp.lt.s32.totalorder %s19, 3
      %p186 = pnand %p184, %p185
      %p187 = pneg %p186
      // Predicated region
      $region9: #{tpu_custom_call.1} parent=5 // pred_check
        _
      $region10: #{tpu_custom_call.1} parent=5 // pred_check_branch
        %189 = sbr.rel (%p186) target = $region12
      $region11: #{tpu_custom_call.1} parent=5 // pred_region
        %s190 = ssub.s32 %s19, 1
        // Predicated region
        $region13: #{tpu_custom_call.1} parent=11 // pred_check
          %p191 = pneg %p66
        $region14: #{tpu_custom_call.1} parent=11 // pred_check_branch
          %193 = sbr.rel (%p191) target = $region16
        $region15: #{tpu_custom_call.1} parent=11 // pred_region
          _
        $region16: #{tpu_custom_call.1} parent=11 // pred_fallthru
          _
        // Predicated region
        $region17: #{tpu_custom_call.1} parent=11 // pred_check
          %p194 = pneg %p87
        $region18: #{tpu_custom_call.1} parent=11 // pred_check_branch
          %196 = sbr.rel (%p194) target = $region20
        $region19: #{tpu_custom_call.1} parent=11 // pred_region
          %198 = vsyncadd [#allocation6], 0
          %s200 = sshll.u32 %s2, 4
          %s201 = int_to_ptr.hbm [resolvable:$true] %s200
          %s202 = sshll.u32 [#allocation5], 4
          %s203 = int_to_ptr.vmem [resolvable:$true] %s202
          %205 = dma.hbm_to_vmem [thread:$0]  %s201, 128, %s203, [#allocation6]
        $region20: #{tpu_custom_call.1} parent=11 // pred_fallthru
          _
        // Predicated region
        $region21: #{tpu_custom_call.1} parent=11 // pred_check
          %p206 = pneg %p108
        $region22: #{tpu_custom_call.1} parent=11 // pred_check_branch
          %208 = sbr.rel (%p206) target = $region24
        $region23: #{tpu_custom_call.1} parent=11 // pred_region
          _
        $region24: #{tpu_custom_call.1} parent=11 // pred_fallthru
          _
        // Predicated region
        $region25: #{tpu_custom_call.1} parent=11 // pred_check
          %p209 = pneg %p129
        $region26: #{tpu_custom_call.1} parent=11 // pred_check_branch
          %211 = sbr.rel (%p209) target = $region28
        $region27: #{tpu_custom_call.1} parent=11 // pred_region
          %213 = vsyncadd [#allocation6], 0
          %s215 = sshll.u32 %s4, 4
          %s216 = int_to_ptr.hbm [resolvable:$true] %s215
          %s217 = sshll.u32 [#allocation7], 4
          %s218 = int_to_ptr.vmem [resolvable:$true] %s217
          %220 = dma.hbm_to_vmem [thread:$0]  %s216, 128, %s218, [#allocation6]
        $region28: #{tpu_custom_call.1} parent=11 // pred_fallthru
          _
        // Predicated region
        $region29: #{tpu_custom_call.1} parent=11 // pred_check
          %p221 = pneg %p150
        $region30: #{tpu_custom_call.1} parent=11 // pred_check_branch
          %223 = sbr.rel (%p221) target = $region32
        $region31: #{tpu_custom_call.1} parent=11 // pred_region
          _
        $region32: #{tpu_custom_call.1} parent=11 // pred_fallthru
          _
      $region12: #{tpu_custom_call.1} parent=5 // pred_fallthru
        _
      %p224 = scmp.lt.s32.totalorder %s19, 2
      // Predicated region
      $region33: #{tpu_custom_call.1} parent=5 // pred_check
        %p225 = pneg %p224
      $region34: #{tpu_custom_call.1} parent=5 // pred_check_branch
        %227 = sbr.rel (%p225) target = $region36
      $region35: #{tpu_custom_call.1} parent=5 // pred_region
        // Predicated region
        $region37: #{tpu_custom_call.1} parent=35 // pred_check
          %p228 = pneg %p39
        $region38: #{tpu_custom_call.1} parent=35 // pred_check_branch
          %230 = sbr.rel (%p228) target = $region40
        $region39: #{tpu_custom_call.1} parent=35 // pred_region
          %s231 = sand.u32 %s29, 1
          %s232 = scalar_lea.sflag [#allocation3], %s231
          %s233 = sand.u32 %s29, 1
          %s234 = smul.addr %s233, 16
          %s235 = scalar_lea.vmem [#allocation2], %s234
          %237 = vsyncadd %s232, 0
          %s238 = smul.addr %s19, 2
          %s239 = smul.addr %s238, 8
          %s240 = scalar_lea.hbm %s0, %s239
          %s242 = sshll.u32 %s240, 4
          %s243 = int_to_ptr.hbm [resolvable:$true] %s242
          %s244 = sshll.u32 %s235, 4
          %s245 = int_to_ptr.vmem [resolvable:$true] %s244
          %247 = dma.hbm_to_vmem [thread:$0]  %s243, 256, %s245, %s232
        $region40: #{tpu_custom_call.1} parent=35 // pred_fallthru
          _
      $region36: #{tpu_custom_call.1} parent=5 // pred_fallthru
        _
      %p248 = scmp.le.s32.totalorder 1, %s19
      %p249 = scmp.lt.s32.totalorder %s19, 3
      %p250 = pnand %p248, %p249
      %p251 = pneg %p250
      // Predicated region
      $region41: #{tpu_custom_call.1} parent=5 // pred_check
        _
      $region42: #{tpu_custom_call.1} parent=5 // pred_check_branch
        %253 = sbr.rel (%p250) target = $region44
      $region43: #{tpu_custom_call.1} parent=5 // pred_region
        %s254 = ssub.s32 %s19, 1
        %s255 = sand.u32 %s32, 1
        %s256 = scalar_lea.sflag [#allocation3], %s255
        %s257 = sand.u32 %s32, 1
        %s258 = smul.addr %s257, 16
        %s259 = scalar_lea.vmem [#allocation2], %s258
        // Predicated region
        $region45: #{tpu_custom_call.1} parent=43 // pred_check
          %p260 = pneg %p45
        $region46: #{tpu_custom_call.1} parent=43 // pred_check_branch
          %262 = sbr.rel (%p260) target = $region48
        $region47: #{tpu_custom_call.1} parent=43 // pred_region
          %264 = dma.done %s256, 256
        $region48: #{tpu_custom_call.1} parent=43 // pred_fallthru
          _
        // Predicated region
        $region49: #{tpu_custom_call.1} parent=43 // pred_check
          %p265 = pneg %p87
        $region50: #{tpu_custom_call.1} parent=43 // pred_check_branch
          %267 = sbr.rel (%p265) target = $region52
        $region51: #{tpu_custom_call.1} parent=43 // pred_region
          %269 = dma.done [#allocation6], 128
        $region52: #{tpu_custom_call.1} parent=43 // pred_fallthru
          _
        // Predicated region
        $region53: #{tpu_custom_call.1} parent=43 // pred_check
          %p270 = pneg %p129
        $region54: #{tpu_custom_call.1} parent=43 // pred_check_branch
          %272 = sbr.rel (%p270) target = $region56
        $region55: #{tpu_custom_call.1} parent=43 // pred_region
          %274 = dma.done [#allocation6], 128
        $region56: #{tpu_custom_call.1} parent=43 // pred_fallthru
          _
        %s275 = sand.u32 %s32, 1
        %s276 = scalar_lea.sflag [#allocation3], %s275
        %s277 = sand.u32 %s32, 1
        %s278 = smul.addr %s277, 16
        %s279 = scalar_lea.vmem [#allocation2], %s278
        %p280 = pneg %p45
        %p281 = pneg %p42
        %p282 = pneg %p66
        %p283 = pneg %p63
        %p284 = pneg %p87
        %p285 = pneg %p84
        %p286 = pneg %p108
        %p287 = pneg %p105
        %p288 = pneg %p129
        %p289 = pneg %p126
        %p290 = pneg %p150
        %p291 = pneg %p147
        %p292 = pneg %p176
        %p293 = pneg %p173
        %s294 = sand.u32 %s163, 1
        %s295 = scalar_lea.sflag [#allocation4], %s294
        %s296 = sand.u32 %s163, 1
        %s297 = smul.addr %s296, 16
        %s298 = scalar_lea.vmem [#allocation8], %s297
        %v299 = vld [vmem:[%s259] sm:$0xff]
        %v300 = vld [vmem:[%s259 + $0x8] sm:$0xff]
        %v301 = vld [vmem:[%s1] sm:$0xff]
        %v302 = vld [vmem:[%s1 + $0x8] sm:$0xff]
        %vm303 = vcmp.ne.f32.partialorder %v301, 0.0
        %vm304 = vcmp.ne.f32.partialorder %v302, 0.0
        %v305 = vld [vmem:[#allocation5] sm:$0xff]
        %v306 = vld [vmem:[#allocation7] sm:$0xff]
        %v307 = vld [vmem:[%s3] sm:$0xff]
        %v308 = vld [vmem:[%s5] sm:$0xff]
        %309 = vrot.lane.b32.xlu0 %v299, 17
        %v310 = vpop.permute.xlu0 %309
        %311 = vrot.lane.b32.xlu0 %v300, 17
        %v312 = vpop.permute.xlu0 %311
        %v313 = vlaneseq
        %v314 = vand.u32 %v313, 127
        %vm315 = vcmp.lt.s32.totalorder %v314, 17
        %v316 = vsel %vm315, %v310, %v312
        %v317 = vsel %vm315, %v312, %v310
        %v318 = vsel %vm303, 1, 0
        %v319 = vsel %vm304, 1, 0
        %vm320 = vcmp.eq.s32.totalorder %v318, 1
        %vm321 = vcmp.eq.s32.totalorder %v319, 1
        %v324 = vrot.slane %v317, 1
        %v325 = vrot.slane %v316, 1
        %v326 = vrot.slane %v317, 2
        %v327 = vrot.slane %v316, 2
        %v328 = vrot.slane %v317, 3
        %v329 = vrot.slane %v316, 3
        %v330 = vrot.slane %v317, 4
        %v331 = vrot.slane %v316, 4
        %v332 = vrot.slane %v317, 5
        %v333 = vrot.slane %v316, 5
        %v334 = vrot.slane %v317, 6
        %v335 = vrot.slane %v316, 6
        %v336 = vrot.slane %v317, 7
        %v337 = vrot.slane %v316, 7
        %v354 = vsel %vm320, %v317, 0.0
        %v355 = vsel %vm321, %v316, 0.0
        %v356 = vsel %vm320, %v324, 0.0
        %v357 = vsel %vm321, %v325, 0.0
        %v358 = vsel %vm320, %v326, 0.0
        %v359 = vsel %vm321, %v327, 0.0
        %v360 = vsel %vm320, %v328, 0.0
        %v361 = vsel %vm321, %v329, 0.0
        %v362 = vsel %vm320, %v330, 0.0
        %v363 = vsel %vm321, %v331, 0.0
        %v364 = vsel %vm320, %v332, 0.0
        %v365 = vsel %vm321, %v333, 0.0
        %v366 = vsel %vm320, %v334, 0.0
        %v367 = vsel %vm321, %v335, 0.0
        %v368 = vsel %vm320, %v336, 0.0
        %v369 = vsel %vm321, %v337, 0.0
        %370 = vrot.lane.b32.xlu0 %v299, 16
        %v371 = vpop.permute.xlu0 %370
        %372 = vrot.lane.b32.xlu0 %v300, 16
        %v373 = vpop.permute.xlu0 %372
        %vm374 = vcmp.lt.s32.totalorder %v314, 16
        %v375 = vsel %vm374, %v371, %v373
        %v376 = vsel %vm374, %v373, %v371
        %v379 = vrot.slane %v376, 7
        %v380 = vrot.slane %v375, 7
        %v381 = vrot.slane %v376, 1
        %v382 = vrot.slane %v375, 1
        %v383 = vrot.slane %v376, 2
        %v384 = vrot.slane %v375, 2
        %v385 = vrot.slane %v376, 3
        %v386 = vrot.slane %v375, 3
        %v387 = vrot.slane %v376, 4
        %v388 = vrot.slane %v375, 4
        %v389 = vrot.slane %v376, 5
        %v390 = vrot.slane %v375, 5
        %v391 = vrot.slane %v376, 6
        %v392 = vrot.slane %v375, 6
        %v409 = vsel %vm320, %v379, 0.0
        %v410 = vsel %vm321, %v380, 0.0
        %v411 = vsel %vm320, %v376, 0.0
        %v412 = vsel %vm321, %v375, 0.0
        %v413 = vsel %vm320, %v381, 0.0
        %v414 = vsel %vm321, %v382, 0.0
        %v415 = vsel %vm320, %v383, 0.0
        %v416 = vsel %vm321, %v384, 0.0
        %v417 = vsel %vm320, %v385, 0.0
        %v418 = vsel %vm321, %v386, 0.0
        %v419 = vsel %vm320, %v387, 0.0
        %v420 = vsel %vm321, %v388, 0.0
        %v421 = vsel %vm320, %v389, 0.0
        %v422 = vsel %vm321, %v390, 0.0
        %v423 = vsel %vm320, %v391, 0.0
        %v424 = vsel %vm321, %v392, 0.0
        %425 = vrot.lane.b32.xlu0 %v299, 15
        %v426 = vpop.permute.xlu0 %425
        %427 = vrot.lane.b32.xlu0 %v300, 15
        %v428 = vpop.permute.xlu0 %427
        %vm429 = vcmp.lt.s32.totalorder %v314, 15
        %v430 = vsel %vm429, %v426, %v428
        %v431 = vsel %vm429, %v428, %v426
        %v434 = vrot.slane %v431, 6
        %v435 = vrot.slane %v430, 6
        %v436 = vrot.slane %v431, 7
        %v437 = vrot.slane %v430, 7
        %v438 = vrot.slane %v431, 1
        %v439 = vrot.slane %v430, 1
        %v440 = vrot.slane %v431, 2
        %v441 = vrot.slane %v430, 2
        %v442 = vrot.slane %v431, 3
        %v443 = vrot.slane %v430, 3
        %v444 = vrot.slane %v431, 4
        %v445 = vrot.slane %v430, 4
        %v446 = vrot.slane %v431, 5
        %v447 = vrot.slane %v430, 5
        %v464 = vsel %vm320, %v434, 0.0
        %v465 = vsel %vm321, %v435, 0.0
        %v466 = vsel %vm320, %v436, 0.0
        %v467 = vsel %vm321, %v437, 0.0
        %v468 = vsel %vm320, %v431, 0.0
        %v469 = vsel %vm321, %v430, 0.0
        %v470 = vsel %vm320, %v438, 0.0
        %v471 = vsel %vm321, %v439, 0.0
        %v472 = vsel %vm320, %v440, 0.0
        %v473 = vsel %vm321, %v441, 0.0
        %v474 = vsel %vm320, %v442, 0.0
        %v475 = vsel %vm321, %v443, 0.0
        %v476 = vsel %vm320, %v444, 0.0
        %v477 = vsel %vm321, %v445, 0.0
        %v478 = vsel %vm320, %v446, 0.0
        %v479 = vsel %vm321, %v447, 0.0
        %480 = vrot.lane.b32.xlu0 %v299, 1
        %v481 = vpop.permute.xlu0 %480
        %482 = vrot.lane.b32.xlu0 %v300, 1
        %v483 = vpop.permute.xlu0 %482
        %vm484 = vcmp.lt.s32.totalorder %v314, 1
        %v485 = vsel %vm484, %v481, %v483
        %v486 = vsel %vm484, %v483, %v481
        %v489 = vrot.slane %v486, 5
        %v490 = vrot.slane %v485, 5
        %v491 = vrot.slane %v486, 6
        %v492 = vrot.slane %v485, 6
        %v493 = vrot.slane %v486, 7
        %v494 = vrot.slane %v485, 7
        %v495 = vrot.slane %v486, 1
        %v496 = vrot.slane %v485, 1
        %v497 = vrot.slane %v486, 2
        %v498 = vrot.slane %v485, 2
        %v499 = vrot.slane %v486, 3
        %v500 = vrot.slane %v485, 3
        %v501 = vrot.slane %v486, 4
        %v502 = vrot.slane %v485, 4
        %v519 = vsel %vm320, %v489, 0.0
        %v520 = vsel %vm321, %v490, 0.0
        %v521 = vsel %vm320, %v491, 0.0
        %v522 = vsel %vm321, %v492, 0.0
        %v523 = vsel %vm320, %v493, 0.0
        %v524 = vsel %vm321, %v494, 0.0
        %v525 = vsel %vm320, %v486, 0.0
        %v526 = vsel %vm321, %v485, 0.0
        %v527 = vsel %vm320, %v495, 0.0
        %v528 = vsel %vm321, %v496, 0.0
        %v529 = vsel %vm320, %v497, 0.0
        %v530 = vsel %vm321, %v498, 0.0
        %v531 = vsel %vm320, %v499, 0.0
        %v532 = vsel %vm321, %v500, 0.0
        %v533 = vsel %vm320, %v501, 0.0
        %v534 = vsel %vm321, %v502, 0.0
        %535 = vrot.lane.b32.xlu0 %v299, 127
        %v536 = vpop.permute.xlu0 %535
        %537 = vrot.lane.b32.xlu0 %v300, 127
        %v538 = vpop.permute.xlu0 %537
        %vm539 = vcmp.lt.s32.totalorder %v314, 127
        %v540 = vsel %vm539, %v536, %v538
        %v541 = vsel %vm539, %v538, %v536
        %v544 = vrot.slane %v540, 4
        %v545 = vrot.slane %v541, 4
        %v546 = vrot.slane %v540, 5
        %v547 = vrot.slane %v541, 5
        %v548 = vrot.slane %v540, 6
        %v549 = vrot.slane %v541, 6
        %v550 = vrot.slane %v540, 7
        %v551 = vrot.slane %v541, 7
        %v552 = vrot.slane %v540, 1
        %v553 = vrot.slane %v541, 1
        %v554 = vrot.slane %v540, 2
        %v555 = vrot.slane %v541, 2
        %v556 = vrot.slane %v540, 3
        %v557 = vrot.slane %v541, 3
        %v574 = vsel %vm320, %v544, 0.0
        %v575 = vsel %vm321, %v545, 0.0
        %v576 = vsel %vm320, %v546, 0.0
        %v577 = vsel %vm321, %v547, 0.0
        %v578 = vsel %vm320, %v548, 0.0
        %v579 = vsel %vm321, %v549, 0.0
        %v580 = vsel %vm320, %v550, 0.0
        %v581 = vsel %vm321, %v551, 0.0
        %v582 = vsel %vm320, %v540, 0.0
        %v583 = vsel %vm321, %v541, 0.0
        %v584 = vsel %vm320, %v552, 0.0
        %v585 = vsel %vm321, %v553, 0.0
        %v586 = vsel %vm320, %v554, 0.0
        %v587 = vsel %vm321, %v555, 0.0
        %v588 = vsel %vm320, %v556, 0.0
        %v589 = vsel %vm321, %v557, 0.0
        %590 = vrot.lane.b32.xlu0 %v299, 113
        %v591 = vpop.permute.xlu0 %590
        %592 = vrot.lane.b32.xlu0 %v300, 113
        %v593 = vpop.permute.xlu0 %592
        %vm594 = vcmp.lt.s32.totalorder %v314, 113
        %v595 = vsel %vm594, %v591, %v593
        %v596 = vsel %vm594, %v593, %v591
        %v599 = vrot.slane %v595, 3
        %v600 = vrot.slane %v596, 3
        %v601 = vrot.slane %v595, 4
        %v602 = vrot.slane %v596, 4
        %v603 = vrot.slane %v595, 5
        %v604 = vrot.slane %v596, 5
        %v605 = vrot.slane %v595, 6
        %v606 = vrot.slane %v596, 6
        %v607 = vrot.slane %v595, 7
        %v608 = vrot.slane %v596, 7
        %v609 = vrot.slane %v595, 1
        %v610 = vrot.slane %v596, 1
        %v611 = vrot.slane %v595, 2
        %v612 = vrot.slane %v596, 2
        %v629 = vsel %vm320, %v599, 0.0
        %v630 = vsel %vm321, %v600, 0.0
        %v631 = vsel %vm320, %v601, 0.0
        %v632 = vsel %vm321, %v602, 0.0
        %v633 = vsel %vm320, %v603, 0.0
        %v634 = vsel %vm321, %v604, 0.0
        %v635 = vsel %vm320, %v605, 0.0
        %v636 = vsel %vm321, %v606, 0.0
        %v637 = vsel %vm320, %v607, 0.0
        %v638 = vsel %vm321, %v608, 0.0
        %v639 = vsel %vm320, %v595, 0.0
        %v640 = vsel %vm321, %v596, 0.0
        %v641 = vsel %vm320, %v609, 0.0
        %v642 = vsel %vm321, %v610, 0.0
        %v643 = vsel %vm320, %v611, 0.0
        %v644 = vsel %vm321, %v612, 0.0
        %645 = vrot.lane.b32.xlu0 %v299, 112
        %v646 = vpop.permute.xlu0 %645
        %647 = vrot.lane.b32.xlu0 %v300, 112
        %v648 = vpop.permute.xlu0 %647
        %vm649 = vcmp.lt.s32.totalorder %v314, 112
        %v650 = vsel %vm649, %v646, %v648
        %v651 = vsel %vm649, %v648, %v646
        %v654 = vrot.slane %v650, 2
        %v655 = vrot.slane %v651, 2
        %v656 = vrot.slane %v650, 3
        %v657 = vrot.slane %v651, 3
        %v658 = vrot.slane %v650, 4
        %v659 = vrot.slane %v651, 4
        %v660 = vrot.slane %v650, 5
        %v661 = vrot.slane %v651, 5
        %v662 = vrot.slane %v650, 6
        %v663 = vrot.slane %v651, 6
        %v664 = vrot.slane %v650, 7
        %v665 = vrot.slane %v651, 7
        %v666 = vrot.slane %v650, 1
        %v667 = vrot.slane %v651, 1
        %v684 = vsel %vm320, %v654, 0.0
        %v685 = vsel %vm321, %v655, 0.0
        %v686 = vsel %vm320, %v656, 0.0
        %v687 = vsel %vm321, %v657, 0.0
        %v688 = vsel %vm320, %v658, 0.0
        %v689 = vsel %vm321, %v659, 0.0
        %v690 = vsel %vm320, %v660, 0.0
        %v691 = vsel %vm321, %v661, 0.0
        %v692 = vsel %vm320, %v662, 0.0
        %v693 = vsel %vm321, %v663, 0.0
        %v694 = vsel %vm320, %v664, 0.0
        %v695 = vsel %vm321, %v665, 0.0
        %v696 = vsel %vm320, %v650, 0.0
        %v697 = vsel %vm321, %v651, 0.0
        %v698 = vsel %vm320, %v666, 0.0
        %v699 = vsel %vm321, %v667, 0.0
        %700 = vrot.lane.b32.xlu0 %v299, 111
        %v701 = vpop.permute.xlu0 %700
        %702 = vrot.lane.b32.xlu0 %v300, 111
        %v703 = vpop.permute.xlu0 %702
        %vm704 = vcmp.lt.s32.totalorder %v314, 111
        %v705 = vsel %vm704, %v701, %v703
        %v706 = vsel %vm704, %v703, %v701
        %v709 = vrot.slane %v705, 1
        %v710 = vrot.slane %v706, 1
        %v711 = vrot.slane %v705, 2
        %v712 = vrot.slane %v706, 2
        %v713 = vrot.slane %v705, 3
        %v714 = vrot.slane %v706, 3
        %v715 = vrot.slane %v705, 4
        %v716 = vrot.slane %v706, 4
        %v717 = vrot.slane %v705, 5
        %v718 = vrot.slane %v706, 5
        %v719 = vrot.slane %v705, 6
        %v720 = vrot.slane %v706, 6
        %v721 = vrot.slane %v705, 7
        %v722 = vrot.slane %v706, 7
        %v739 = vsel %vm320, %v709, 0.0
        %v740 = vsel %vm321, %v710, 0.0
        %v741 = vsel %vm320, %v711, 0.0
        %v742 = vsel %vm321, %v712, 0.0
        %v743 = vsel %vm320, %v713, 0.0
        %v744 = vsel %vm321, %v714, 0.0
        %v745 = vsel %vm320, %v715, 0.0
        %v746 = vsel %vm321, %v716, 0.0
        %v747 = vsel %vm320, %v717, 0.0
        %v748 = vsel %vm321, %v718, 0.0
        %v749 = vsel %vm320, %v719, 0.0
        %v750 = vsel %vm321, %v720, 0.0
        %v751 = vsel %vm320, %v721, 0.0
        %v752 = vsel %vm321, %v722, 0.0
        %v753 = vsel %vm320, %v705, 0.0
        %v754 = vsel %vm321, %v706, 0.0
        %v771 = vrot.slane %v356, 7
        %vm772 = vcmask 1041409
        %v773 = vsel %vm772, %v771, %v354
        %v774 = vrot.slane %v358, 6
        %vm775 = vcmask 1042434
        %v776 = vsel %vm775, %v774, %v773
        %v777 = vrot.slane %v360, 5
        %vm778 = vcmask 1043459
        %v779 = vsel %vm778, %v777, %v776
        %v780 = vrot.slane %v362, 4
        %vm781 = vcmask 1044484
        %v782 = vsel %vm781, %v780, %v779
        %v783 = vrot.slane %v364, 3
        %vm784 = vcmask 1045509
        %v785 = vsel %vm784, %v783, %v782
        %v786 = vrot.slane %v366, 2
        %vm787 = vcmask 1046534
        %v788 = vsel %vm787, %v786, %v785
        %v789 = vrot.slane %v368, 1
        %vm790 = vcmask 1047559
        %v791 = vsel %vm790, %v789, %v788
        %v792 = vrot.slane %v357, 7
        %v793 = vsel %vm772, %v792, %v355
        %v794 = vrot.slane %v359, 6
        %v795 = vsel %vm775, %v794, %v793
        %v796 = vrot.slane %v361, 5
        %v797 = vsel %vm778, %v796, %v795
        %v798 = vrot.slane %v363, 4
        %v799 = vsel %vm781, %v798, %v797
        %v800 = vrot.slane %v365, 3
        %v801 = vsel %vm784, %v800, %v799
        %v802 = vrot.slane %v367, 2
        %v803 = vsel %vm787, %v802, %v801
        %v804 = vrot.slane %v369, 1
        %v805 = vsel %vm790, %v804, %v803
        %v824 = vrot.slane %v409, 1
        %v825 = vsel %vm772, %v411, %v824
        %v826 = vrot.slane %v413, 7
        %v827 = vsel %vm775, %v826, %v825
        %v828 = vrot.slane %v415, 6
        %v829 = vsel %vm778, %v828, %v827
        %v830 = vrot.slane %v417, 5
        %v831 = vsel %vm781, %v830, %v829
        %v832 = vrot.slane %v419, 4
        %v833 = vsel %vm784, %v832, %v831
        %v834 = vrot.slane %v421, 3
        %v835 = vsel %vm787, %v834, %v833
        %v836 = vrot.slane %v423, 2
        %v837 = vsel %vm790, %v836, %v835
        %v838 = vrot.slane %v410, 1
        %v839 = vsel %vm772, %v412, %v838
        %v840 = vrot.slane %v414, 7
        %v841 = vsel %vm775, %v840, %v839
        %v842 = vrot.slane %v416, 6
        %v843 = vsel %vm778, %v842, %v841
        %v844 = vrot.slane %v418, 5
        %v845 = vsel %vm781, %v844, %v843
        %v846 = vrot.slane %v420, 4
        %v847 = vsel %vm784, %v846, %v845
        %v848 = vrot.slane %v422, 3
        %v849 = vsel %vm787, %v848, %v847
        %v850 = vrot.slane %v424, 2
        %v851 = vsel %vm790, %v850, %v849
        %v870 = vrot.slane %v464, 2
        %v871 = vrot.slane %v466, 1
        %v872 = vsel %vm772, %v871, %v870
        %v873 = vsel %vm775, %v468, %v872
        %v874 = vrot.slane %v470, 7
        %v875 = vsel %vm778, %v874, %v873
        %v876 = vrot.slane %v472, 6
        %v877 = vsel %vm781, %v876, %v875
        %v878 = vrot.slane %v474, 5
        %v879 = vsel %vm784, %v878, %v877
        %v880 = vrot.slane %v476, 4
        %v881 = vsel %vm787, %v880, %v879
        %v882 = vrot.slane %v478, 3
        %v883 = vsel %vm790, %v882, %v881
        %v884 = vrot.slane %v465, 2
        %v885 = vrot.slane %v467, 1
        %v886 = vsel %vm772, %v885, %v884
        %v887 = vsel %vm775, %v469, %v886
        %v888 = vrot.slane %v471, 7
        %v889 = vsel %vm778, %v888, %v887
        %v890 = vrot.slane %v473, 6
        %v891 = vsel %vm781, %v890, %v889
        %v892 = vrot.slane %v475, 5
        %v893 = vsel %vm784, %v892, %v891
        %v894 = vrot.slane %v477, 4
        %v895 = vsel %vm787, %v894, %v893
        %v896 = vrot.slane %v479, 3
        %v897 = vsel %vm790, %v896, %v895
        %v916 = vrot.slane %v519, 3
        %v917 = vrot.slane %v521, 2
        %v918 = vsel %vm772, %v917, %v916
        %v919 = vrot.slane %v523, 1
        %v920 = vsel %vm775, %v919, %v918
        %v921 = vsel %vm778, %v525, %v920
        %v922 = vrot.slane %v527, 7
        %v923 = vsel %vm781, %v922, %v921
        %v924 = vrot.slane %v529, 6
        %v925 = vsel %vm784, %v924, %v923
        %v926 = vrot.slane %v531, 5
        %v927 = vsel %vm787, %v926, %v925
        %v928 = vrot.slane %v533, 4
        %v929 = vsel %vm790, %v928, %v927
        %v930 = vrot.slane %v520, 3
        %v931 = vrot.slane %v522, 2
        %v932 = vsel %vm772, %v931, %v930
        %v933 = vrot.slane %v524, 1
        %v934 = vsel %vm775, %v933, %v932
        %v935 = vsel %vm778, %v526, %v934
        %v936 = vrot.slane %v528, 7
        %v937 = vsel %vm781, %v936, %v935
        %v938 = vrot.slane %v530, 6
        %v939 = vsel %vm784, %v938, %v937
        %v940 = vrot.slane %v532, 5
        %v941 = vsel %vm787, %v940, %v939
        %v942 = vrot.slane %v534, 4
        %v943 = vsel %vm790, %v942, %v941
        %v962 = vrot.slane %v574, 4
        %v963 = vrot.slane %v576, 3
        %v964 = vsel %vm772, %v963, %v962
        %v965 = vrot.slane %v578, 2
        %v966 = vsel %vm775, %v965, %v964
        %v967 = vrot.slane %v580, 1
        %v968 = vsel %vm778, %v967, %v966
        %v969 = vsel %vm781, %v582, %v968
        %v970 = vrot.slane %v584, 7
        %v971 = vsel %vm784, %v970, %v969
        %v972 = vrot.slane %v586, 6
        %v973 = vsel %vm787, %v972, %v971
        %v974 = vrot.slane %v588, 5
        %v975 = vsel %vm790, %v974, %v973
        %v976 = vrot.slane %v575, 4
        %v977 = vrot.slane %v577, 3
        %v978 = vsel %vm772, %v977, %v976
        %v979 = vrot.slane %v579, 2
        %v980 = vsel %vm775, %v979, %v978
        %v981 = vrot.slane %v581, 1
        %v982 = vsel %vm778, %v981, %v980
        %v983 = vsel %vm781, %v583, %v982
        %v984 = vrot.slane %v585, 7
        %v985 = vsel %vm784, %v984, %v983
        %v986 = vrot.slane %v587, 6
        %v987 = vsel %vm787, %v986, %v985
        %v988 = vrot.slane %v589, 5
        %v989 = vsel %vm790, %v988, %v987
        %v1008 = vrot.slane %v629, 5
        %v1009 = vrot.slane %v631, 4
        %v1010 = vsel %vm772, %v1009, %v1008
        %v1011 = vrot.slane %v633, 3
        %v1012 = vsel %vm775, %v1011, %v1010
        %v1013 = vrot.slane %v635, 2
        %v1014 = vsel %vm778, %v1013, %v1012
        %v1015 = vrot.slane %v637, 1
        %v1016 = vsel %vm781, %v1015, %v1014
        %v1017 = vsel %vm784, %v639, %v1016
        %v1018 = vrot.slane %v641, 7
        %v1019 = vsel %vm787, %v1018, %v1017
        %v1020 = vrot.slane %v643, 6
        %v1021 = vsel %vm790, %v1020, %v1019
        %v1022 = vrot.slane %v630, 5
        %v1023 = vrot.slane %v632, 4
        %v1024 = vsel %vm772, %v1023, %v1022
        %v1025 = vrot.slane %v634, 3
        %v1026 = vsel %vm775, %v1025, %v1024
        %v1027 = vrot.slane %v636, 2
        %v1028 = vsel %vm778, %v1027, %v1026
        %v1029 = vrot.slane %v638, 1
        %v1030 = vsel %vm781, %v1029, %v1028
        %v1031 = vsel %vm784, %v640, %v1030
        %v1032 = vrot.slane %v642, 7
        %v1033 = vsel %vm787, %v1032, %v1031
        %v1034 = vrot.slane %v644, 6
        %v1035 = vsel %vm790, %v1034, %v1033
        %v1054 = vrot.slane %v684, 6
        %v1055 = vrot.slane %v686, 5
        %v1056 = vsel %vm772, %v1055, %v1054
        %v1057 = vrot.slane %v688, 4
        %v1058 = vsel %vm775, %v1057, %v1056
        %v1059 = vrot.slane %v690, 3
        %v1060 = vsel %vm778, %v1059, %v1058
        %v1061 = vrot.slane %v692, 2
        %v1062 = vsel %vm781, %v1061, %v1060
        %v1063 = vrot.slane %v694, 1
        %v1064 = vsel %vm784, %v1063, %v1062
        %v1065 = vsel %vm787, %v696, %v1064
        %v1066 = vrot.slane %v698, 7
        %v1067 = vsel %vm790, %v1066, %v1065
        %v1068 = vrot.slane %v685, 6
        %v1069 = vrot.slane %v687, 5
        %v1070 = vsel %vm772, %v1069, %v1068
        %v1071 = vrot.slane %v689, 4
        %v1072 = vsel %vm775, %v1071, %v1070
        %v1073 = vrot.slane %v691, 3
        %v1074 = vsel %vm778, %v1073, %v1072
        %v1075 = vrot.slane %v693, 2
        %v1076 = vsel %vm781, %v1075, %v1074
        %v1077 = vrot.slane %v695, 1
        %v1078 = vsel %vm784, %v1077, %v1076
        %v1079 = vsel %vm787, %v697, %v1078
        %v1080 = vrot.slane %v699, 7
        %v1081 = vsel %vm790, %v1080, %v1079
        %v1100 = vrot.slane %v739, 7
        %v1101 = vrot.slane %v741, 6
        %v1102 = vsel %vm772, %v1101, %v1100
        %v1103 = vrot.slane %v743, 5
        %v1104 = vsel %vm775, %v1103, %v1102
        %v1105 = vrot.slane %v745, 4
        %v1106 = vsel %vm778, %v1105, %v1104
        %v1107 = vrot.slane %v747, 3
        %v1108 = vsel %vm781, %v1107, %v1106
        %v1109 = vrot.slane %v749, 2
        %v1110 = vsel %vm784, %v1109, %v1108
        %v1111 = vrot.slane %v751, 1
        %v1112 = vsel %vm787, %v1111, %v1110
        %v1113 = vsel %vm790, %v753, %v1112
        %v1114 = vrot.slane %v740, 7
        %v1115 = vrot.slane %v742, 6
        %v1116 = vsel %vm772, %v1115, %v1114
        %v1117 = vrot.slane %v744, 5
        %v1118 = vsel %vm775, %v1117, %v1116
        %v1119 = vrot.slane %v746, 4
        %v1120 = vsel %vm778, %v1119, %v1118
        %v1121 = vrot.slane %v748, 3
        %v1122 = vsel %vm781, %v1121, %v1120
        %v1123 = vrot.slane %v750, 2
        %v1124 = vsel %vm784, %v1123, %v1122
        %v1125 = vrot.slane %v752, 1
        %v1126 = vsel %vm787, %v1125, %v1124
        %v1127 = vsel %vm790, %v754, %v1126
        %1131 = vset.pattern.permute.xlu0 0
        %1132 = vperm.xlu0 %1131, %v307
        %v1133 = vpop.permute.xlu0 %1132
        %vm1135 = vcmask 588800
        %v1137 = vsel %vm1135, %v305, 0
        %1139 = vmatpush.msra.mxu0 0.0
        %1140 = vmatpush.msra.mxu0 0.0
        %1141 = vmatpush.msra.mxu0 0.0
        %1142 = vmatpush.msra.mxu0 0.0
        %1143 = vmatpush.msra.mxu0 0.0
        %1144 = vmatpush.msra.mxu0 0.0
        %1145 = vmatpush.msra.mxu0 0.0
        %1146 = vmatpush.msra.mxu0 %v1113
        %1147 = vmatpush.msra.mxu0 %v1067
        %1148 = vmatpush.msra.mxu0 %v1021
        %1149 = vmatpush.msra.mxu0 %v975
        %1150 = vmatpush.msra.mxu0 %v299
        %1151 = vmatpush.msra.mxu0 %v929
        %1152 = vmatpush.msra.mxu0 %v883
        %1153 = vmatpush.msra.mxu0 %v837
        %1154 = vmatpush.msra.mxu0 %v791
        %1155 = vmatmul.f32.gmra.mxu0 %v1137
        %v1156 = vpop.f32.mrf.mxu0
        %v1157 = vadd.f32 %v1133, %v1156
        %1158 = vdwg.mxu0
        %1159 = vmatpush.msra.mxu0 0.0
        %1160 = vmatpush.msra.mxu0 0.0
        %1161 = vmatpush.msra.mxu0 0.0
        %1162 = vmatpush.msra.mxu0 0.0
        %1163 = vmatpush.msra.mxu0 0.0
        %1164 = vmatpush.msra.mxu0 0.0
        %1165 = vmatpush.msra.mxu0 0.0
        %1166 = vmatpush.msra.mxu0 %v1127
        %1167 = vmatpush.msra.mxu0 %v1081
        %1168 = vmatpush.msra.mxu0 %v1035
        %1169 = vmatpush.msra.mxu0 %v989
        %1170 = vmatpush.msra.mxu0 %v300
        %1171 = vmatpush.msra.mxu0 %v943
        %1172 = vmatpush.msra.mxu0 %v897
        %1173 = vmatpush.msra.mxu0 %v851
        %1174 = vmatpush.msra.mxu0 %v805
        %1175 = vmatmul.f32.gmra.mxu0 %v1137
        %v1176 = vpop.f32.mrf.mxu0
        %v1177 = vadd.f32 %v1133, %v1176
        %1178 = vdwg.mxu0
        %v1179 = vmul.f32 %v1157, 0.5
        %v1180 = vmul.f32 %v1177, 0.5
        %v1181 = vmul.f32 %v1157, 0.70710677
        %v1182 = vmul.f32 %v1177, 0.70710677
        %v1183 = vmul.f32 %v1181, %v1181
        %v1184 = vmin.f32 16.0, %v1183
        %v1185 = vmul.f32 %v1184, 2.1237322e-06
        %v1186 = vadd.f32 %v1185, 0.00028619796
        %v1187 = vmul.f32 %v1184, %v1186
        %v1188 = vadd.f32 %v1187, 0.0036580483
        %v1189 = vmul.f32 %v1184, %v1188
        %v1190 = vadd.f32 %v1189, 0.05243302
        %v1191 = vmul.f32 %v1184, %v1190
        %v1192 = vadd.f32 %v1191, 0.18741608
        %v1193 = vmul.f32 %v1184, %v1192
        %v1194 = vadd.f32 %v1193, 1.1283791
        %v1195 = vmul.f32 %v1181, %v1194
        %v1196 = vmul.f32 %v1184, 3.8918573e-05
        %v1197 = vadd.f32 %v1196, 0.001143296
        %v1198 = vmul.f32 %v1184, %v1197
        %v1199 = vadd.f32 %v1198, 0.014752088
        %v1200 = vmul.f32 %v1184, %v1199
        %v1201 = vadd.f32 %v1200, 0.112945676
        %v1202 = vmul.f32 %v1184, %v1201
        %v1203 = vadd.f32 %v1202, 0.4994258
        %v1204 = vmul.f32 %v1184, %v1203
        %v1205 = vadd.f32 %v1204, 1.0
        %v1206 = vrcp.pop %v1205
        %v1207 = vmul.f32 %v1205, %v1206
        %v1208 = vsub.f32 1.0, %v1207
        %v1209 = vmul.f32 %v1206, %v1208
        %v1210 = vadd.f32 %v1206, %v1209
        %vm1211 = vweird.f32 %v1205
        %vm1212 = vweird.f32 %v1206
        %vm1213 = vmor %vm1211, %vm1212
        %v1214 = vsel %vm1213, %v1206, %v1210
        %v1215 = vand.u32 2147483647, %v1205
        %vm1216 = vcmp.eq.f32.partialorder %v1215, 8.507059e+37
        %v1217 = vand.u32 %v1205, 2147483648
        %v1218 = vor.u32 1.1754944e-38, %v1217
        %v1219 = vsel %vm1216, %v1218, %v1214
        %v1220 = vmul.f32 %v1195, %v1219
        %v1221 = vmin.f32 %v1220, 1.0
        %v1222 = vmax.f32 %v1221, -1.0
        %v1223 = vmul.f32 %v1182, %v1182
        %v1224 = vmin.f32 16.0, %v1223
        %v1225 = vmul.f32 %v1224, 2.1237322e-06
        %v1226 = vadd.f32 %v1225, 0.00028619796
        %v1227 = vmul.f32 %v1224, %v1226
        %v1228 = vadd.f32 %v1227, 0.0036580483
        %v1229 = vmul.f32 %v1224, %v1228
        %v1230 = vadd.f32 %v1229, 0.05243302
        %v1231 = vmul.f32 %v1224, %v1230
        %v1232 = vadd.f32 %v1231, 0.18741608
        %v1233 = vmul.f32 %v1224, %v1232
        %v1234 = vadd.f32 %v1233, 1.1283791
        %v1235 = vmul.f32 %v1182, %v1234
        %v1236 = vmul.f32 %v1224, 3.8918573e-05
        %v1237 = vadd.f32 %v1236, 0.001143296
        %v1238 = vmul.f32 %v1224, %v1237
        %v1239 = vadd.f32 %v1238, 0.014752088
        %v1240 = vmul.f32 %v1224, %v1239
        %v1241 = vadd.f32 %v1240, 0.112945676
        %v1242 = vmul.f32 %v1224, %v1241
        %v1243 = vadd.f32 %v1242, 0.4994258
        %v1244 = vmul.f32 %v1224, %v1243
        %v1245 = vadd.f32 %v1244, 1.0
        %v1246 = vrcp.pop %v1245
        %v1247 = vmul.f32 %v1245, %v1246
        %v1248 = vsub.f32 1.0, %v1247
        %v1249 = vmul.f32 %v1246, %v1248
        %v1250 = vadd.f32 %v1246, %v1249
        %vm1251 = vweird.f32 %v1245
        %vm1252 = vweird.f32 %v1246
        %vm1253 = vmor %vm1251, %vm1252
        %v1254 = vsel %vm1253, %v1246, %v1250
        %v1255 = vand.u32 2147483647, %v1245
        %vm1256 = vcmp.eq.f32.partialorder %v1255, 8.507059e+37
        %v1257 = vand.u32 %v1245, 2147483648
        %v1258 = vor.u32 1.1754944e-38, %v1257
        %v1259 = vsel %vm1256, %v1258, %v1254
        %v1260 = vmul.f32 %v1235, %v1259
        %v1261 = vmin.f32 %v1260, 1.0
        %v1262 = vmax.f32 %v1261, -1.0
        %v1263 = vadd.f32 %v1222, 1.0
        %v1264 = vadd.f32 %v1262, 1.0
        %v1265 = vmul.f32 %v1179, %v1263
        %v1266 = vmul.f32 %v1180, %v1264
        %1267 = vrot.lane.b32.xlu0 %v1265, 17
        %v1268 = vpop.permute.xlu0 %1267
        %1269 = vrot.lane.b32.xlu0 %v1266, 17
        %v1270 = vpop.permute.xlu0 %1269
        %v1271 = vsel %vm315, %v1268, %v1270
        %v1272 = vsel %vm315, %v1270, %v1268
        %v1275 = vrot.slane %v1272, 1
        %v1276 = vrot.slane %v1271, 1
        %v1277 = vrot.slane %v1272, 2
        %v1278 = vrot.slane %v1271, 2
        %v1279 = vrot.slane %v1272, 3
        %v1280 = vrot.slane %v1271, 3
        %v1281 = vrot.slane %v1272, 4
        %v1282 = vrot.slane %v1271, 4
        %v1283 = vrot.slane %v1272, 5
        %v1284 = vrot.slane %v1271, 5
        %v1285 = vrot.slane %v1272, 6
        %v1286 = vrot.slane %v1271, 6
        %v1287 = vrot.slane %v1272, 7
        %v1288 = vrot.slane %v1271, 7
        %v1305 = vsel %vm320, %v1272, 0.0
        %v1306 = vsel %vm321, %v1271, 0.0
        %v1307 = vsel %vm320, %v1275, 0.0
        %v1308 = vsel %vm321, %v1276, 0.0
        %v1309 = vsel %vm320, %v1277, 0.0
        %v1310 = vsel %vm321, %v1278, 0.0
        %v1311 = vsel %vm320, %v1279, 0.0
        %v1312 = vsel %vm321, %v1280, 0.0
        %v1313 = vsel %vm320, %v1281, 0.0
        %v1314 = vsel %vm321, %v1282, 0.0
        %v1315 = vsel %vm320, %v1283, 0.0
        %v1316 = vsel %vm321, %v1284, 0.0
        %v1317 = vsel %vm320, %v1285, 0.0
        %v1318 = vsel %vm321, %v1286, 0.0
        %v1319 = vsel %vm320, %v1287, 0.0
        %v1320 = vsel %vm321, %v1288, 0.0
        %1321 = vrot.lane.b32.xlu0 %v1265, 16
        %v1322 = vpop.permute.xlu0 %1321
        %1323 = vrot.lane.b32.xlu0 %v1266, 16
        %v1324 = vpop.permute.xlu0 %1323
        %v1325 = vsel %vm374, %v1322, %v1324
        %v1326 = vsel %vm374, %v1324, %v1322
        %v1329 = vrot.slane %v1326, 7
        %v1330 = vrot.slane %v1325, 7
        %v1331 = vrot.slane %v1326, 1
        %v1332 = vrot.slane %v1325, 1
        %v1333 = vrot.slane %v1326, 2
        %v1334 = vrot.slane %v1325, 2
        %v1335 = vrot.slane %v1326, 3
        %v1336 = vrot.slane %v1325, 3
        %v1337 = vrot.slane %v1326, 4
        %v1338 = vrot.slane %v1325, 4
        %v1339 = vrot.slane %v1326, 5
        %v1340 = vrot.slane %v1325, 5
        %v1341 = vrot.slane %v1326, 6
        %v1342 = vrot.slane %v1325, 6
        %v1359 = vsel %vm320, %v1329, 0.0
        %v1360 = vsel %vm321, %v1330, 0.0
        %v1361 = vsel %vm320, %v1326, 0.0
        %v1362 = vsel %vm321, %v1325, 0.0
        %v1363 = vsel %vm320, %v1331, 0.0
        %v1364 = vsel %vm321, %v1332, 0.0
        %v1365 = vsel %vm320, %v1333, 0.0
        %v1366 = vsel %vm321, %v1334, 0.0
        %v1367 = vsel %vm320, %v1335, 0.0
        %v1368 = vsel %vm321, %v1336, 0.0
        %v1369 = vsel %vm320, %v1337, 0.0
        %v1370 = vsel %vm321, %v1338, 0.0
        %v1371 = vsel %vm320, %v1339, 0.0
        %v1372 = vsel %vm321, %v1340, 0.0
        %v1373 = vsel %vm320, %v1341, 0.0
        %v1374 = vsel %vm321, %v1342, 0.0
        %1375 = vrot.lane.b32.xlu0 %v1265, 15
        %v1376 = vpop.permute.xlu0 %1375
        %1377 = vrot.lane.b32.xlu0 %v1266, 15
        %v1378 = vpop.permute.xlu0 %1377
        %v1379 = vsel %vm429, %v1376, %v1378
        %v1380 = vsel %vm429, %v1378, %v1376
        %v1383 = vrot.slane %v1380, 6
        %v1384 = vrot.slane %v1379, 6
        %v1385 = vrot.slane %v1380, 7
        %v1386 = vrot.slane %v1379, 7
        %v1387 = vrot.slane %v1380, 1
        %v1388 = vrot.slane %v1379, 1
        %v1389 = vrot.slane %v1380, 2
        %v1390 = vrot.slane %v1379, 2
        %v1391 = vrot.slane %v1380, 3
        %v1392 = vrot.slane %v1379, 3
        %v1393 = vrot.slane %v1380, 4
        %v1394 = vrot.slane %v1379, 4
        %v1395 = vrot.slane %v1380, 5
        %v1396 = vrot.slane %v1379, 5
        %v1413 = vsel %vm320, %v1383, 0.0
        %v1414 = vsel %vm321, %v1384, 0.0
        %v1415 = vsel %vm320, %v1385, 0.0
        %v1416 = vsel %vm321, %v1386, 0.0
        %v1417 = vsel %vm320, %v1380, 0.0
        %v1418 = vsel %vm321, %v1379, 0.0
        %v1419 = vsel %vm320, %v1387, 0.0
        %v1420 = vsel %vm321, %v1388, 0.0
        %v1421 = vsel %vm320, %v1389, 0.0
        %v1422 = vsel %vm321, %v1390, 0.0
        %v1423 = vsel %vm320, %v1391, 0.0
        %v1424 = vsel %vm321, %v1392, 0.0
        %v1425 = vsel %vm320, %v1393, 0.0
        %v1426 = vsel %vm321, %v1394, 0.0
        %v1427 = vsel %vm320, %v1395, 0.0
        %v1428 = vsel %vm321, %v1396, 0.0
        %1429 = vrot.lane.b32.xlu0 %v1265, 1
        %v1430 = vpop.permute.xlu0 %1429
        %1431 = vrot.lane.b32.xlu0 %v1266, 1
        %v1432 = vpop.permute.xlu0 %1431
        %v1433 = vsel %vm484, %v1430, %v1432
        %v1434 = vsel %vm484, %v1432, %v1430
        %v1437 = vrot.slane %v1434, 5
        %v1438 = vrot.slane %v1433, 5
        %v1439 = vrot.slane %v1434, 6
        %v1440 = vrot.slane %v1433, 6
        %v1441 = vrot.slane %v1434, 7
        %v1442 = vrot.slane %v1433, 7
        %v1443 = vrot.slane %v1434, 1
        %v1444 = vrot.slane %v1433, 1
        %v1445 = vrot.slane %v1434, 2
        %v1446 = vrot.slane %v1433, 2
        %v1447 = vrot.slane %v1434, 3
        %v1448 = vrot.slane %v1433, 3
        %v1449 = vrot.slane %v1434, 4
        %v1450 = vrot.slane %v1433, 4
        %v1467 = vsel %vm320, %v1437, 0.0
        %v1468 = vsel %vm321, %v1438, 0.0
        %v1469 = vsel %vm320, %v1439, 0.0
        %v1470 = vsel %vm321, %v1440, 0.0
        %v1471 = vsel %vm320, %v1441, 0.0
        %v1472 = vsel %vm321, %v1442, 0.0
        %v1473 = vsel %vm320, %v1434, 0.0
        %v1474 = vsel %vm321, %v1433, 0.0
        %v1475 = vsel %vm320, %v1443, 0.0
        %v1476 = vsel %vm321, %v1444, 0.0
        %v1477 = vsel %vm320, %v1445, 0.0
        %v1478 = vsel %vm321, %v1446, 0.0
        %v1479 = vsel %vm320, %v1447, 0.0
        %v1480 = vsel %vm321, %v1448, 0.0
        %v1481 = vsel %vm320, %v1449, 0.0
        %v1482 = vsel %vm321, %v1450, 0.0
        %1483 = vrot.lane.b32.xlu0 %v1265, 127
        %v1484 = vpop.permute.xlu0 %1483
        %1485 = vrot.lane.b32.xlu0 %v1266, 127
        %v1486 = vpop.permute.xlu0 %1485
        %v1487 = vsel %vm539, %v1484, %v1486
        %v1488 = vsel %vm539, %v1486, %v1484
        %v1491 = vrot.slane %v1487, 4
        %v1492 = vrot.slane %v1488, 4
        %v1493 = vrot.slane %v1487, 5
        %v1494 = vrot.slane %v1488, 5
        %v1495 = vrot.slane %v1487, 6
        %v1496 = vrot.slane %v1488, 6
        %v1497 = vrot.slane %v1487, 7
        %v1498 = vrot.slane %v1488, 7
        %v1499 = vrot.slane %v1487, 1
        %v1500 = vrot.slane %v1488, 1
        %v1501 = vrot.slane %v1487, 2
        %v1502 = vrot.slane %v1488, 2
        %v1503 = vrot.slane %v1487, 3
        %v1504 = vrot.slane %v1488, 3
        %v1521 = vsel %vm320, %v1491, 0.0
        %v1522 = vsel %vm321, %v1492, 0.0
        %v1523 = vsel %vm320, %v1493, 0.0
        %v1524 = vsel %vm321, %v1494, 0.0
        %v1525 = vsel %vm320, %v1495, 0.0
        %v1526 = vsel %vm321, %v1496, 0.0
        %v1527 = vsel %vm320, %v1497, 0.0
        %v1528 = vsel %vm321, %v1498, 0.0
        %v1529 = vsel %vm320, %v1487, 0.0
        %v1530 = vsel %vm321, %v1488, 0.0
        %v1531 = vsel %vm320, %v1499, 0.0
        %v1532 = vsel %vm321, %v1500, 0.0
        %v1533 = vsel %vm320, %v1501, 0.0
        %v1534 = vsel %vm321, %v1502, 0.0
        %v1535 = vsel %vm320, %v1503, 0.0
        %v1536 = vsel %vm321, %v1504, 0.0
        %1537 = vrot.lane.b32.xlu0 %v1265, 113
        %v1538 = vpop.permute.xlu0 %1537
        %1539 = vrot.lane.b32.xlu0 %v1266, 113
        %v1540 = vpop.permute.xlu0 %1539
        %v1541 = vsel %vm594, %v1538, %v1540
        %v1542 = vsel %vm594, %v1540, %v1538
        %v1545 = vrot.slane %v1541, 3
        %v1546 = vrot.slane %v1542, 3
        %v1547 = vrot.slane %v1541, 4
        %v1548 = vrot.slane %v1542, 4
        %v1549 = vrot.slane %v1541, 5
        %v1550 = vrot.slane %v1542, 5
        %v1551 = vrot.slane %v1541, 6
        %v1552 = vrot.slane %v1542, 6
        %v1553 = vrot.slane %v1541, 7
        %v1554 = vrot.slane %v1542, 7
        %v1555 = vrot.slane %v1541, 1
        %v1556 = vrot.slane %v1542, 1
        %v1557 = vrot.slane %v1541, 2
        %v1558 = vrot.slane %v1542, 2
        %v1575 = vsel %vm320, %v1545, 0.0
        %v1576 = vsel %vm321, %v1546, 0.0
        %v1577 = vsel %vm320, %v1547, 0.0
        %v1578 = vsel %vm321, %v1548, 0.0
        %v1579 = vsel %vm320, %v1549, 0.0
        %v1580 = vsel %vm321, %v1550, 0.0
        %v1581 = vsel %vm320, %v1551, 0.0
        %v1582 = vsel %vm321, %v1552, 0.0
        %v1583 = vsel %vm320, %v1553, 0.0
        %v1584 = vsel %vm321, %v1554, 0.0
        %v1585 = vsel %vm320, %v1541, 0.0
        %v1586 = vsel %vm321, %v1542, 0.0
        %v1587 = vsel %vm320, %v1555, 0.0
        %v1588 = vsel %vm321, %v1556, 0.0
        %v1589 = vsel %vm320, %v1557, 0.0
        %v1590 = vsel %vm321, %v1558, 0.0
        %1591 = vrot.lane.b32.xlu0 %v1265, 112
        %v1592 = vpop.permute.xlu0 %1591
        %1593 = vrot.lane.b32.xlu0 %v1266, 112
        %v1594 = vpop.permute.xlu0 %1593
        %v1595 = vsel %vm649, %v1592, %v1594
        %v1596 = vsel %vm649, %v1594, %v1592
        %v1599 = vrot.slane %v1595, 2
        %v1600 = vrot.slane %v1596, 2
        %v1601 = vrot.slane %v1595, 3
        %v1602 = vrot.slane %v1596, 3
        %v1603 = vrot.slane %v1595, 4
        %v1604 = vrot.slane %v1596, 4
        %v1605 = vrot.slane %v1595, 5
        %v1606 = vrot.slane %v1596, 5
        %v1607 = vrot.slane %v1595, 6
        %v1608 = vrot.slane %v1596, 6
        %v1609 = vrot.slane %v1595, 7
        %v1610 = vrot.slane %v1596, 7
        %v1611 = vrot.slane %v1595, 1
        %v1612 = vrot.slane %v1596, 1
        %v1629 = vsel %vm320, %v1599, 0.0
        %v1630 = vsel %vm321, %v1600, 0.0
        %v1631 = vsel %vm320, %v1601, 0.0
        %v1632 = vsel %vm321, %v1602, 0.0
        %v1633 = vsel %vm320, %v1603, 0.0
        %v1634 = vsel %vm321, %v1604, 0.0
        %v1635 = vsel %vm320, %v1605, 0.0
        %v1636 = vsel %vm321, %v1606, 0.0
        %v1637 = vsel %vm320, %v1607, 0.0
        %v1638 = vsel %vm321, %v1608, 0.0
        %v1639 = vsel %vm320, %v1609, 0.0
        %v1640 = vsel %vm321, %v1610, 0.0
        %v1641 = vsel %vm320, %v1595, 0.0
        %v1642 = vsel %vm321, %v1596, 0.0
        %v1643 = vsel %vm320, %v1611, 0.0
        %v1644 = vsel %vm321, %v1612, 0.0
        %1645 = vrot.lane.b32.xlu0 %v1265, 111
        %v1646 = vpop.permute.xlu0 %1645
        %1647 = vrot.lane.b32.xlu0 %v1266, 111
        %v1648 = vpop.permute.xlu0 %1647
        %v1649 = vsel %vm704, %v1646, %v1648
        %v1650 = vsel %vm704, %v1648, %v1646
        %v1653 = vrot.slane %v1649, 1
        %v1654 = vrot.slane %v1650, 1
        %v1655 = vrot.slane %v1649, 2
        %v1656 = vrot.slane %v1650, 2
        %v1657 = vrot.slane %v1649, 3
        %v1658 = vrot.slane %v1650, 3
        %v1659 = vrot.slane %v1649, 4
        %v1660 = vrot.slane %v1650, 4
        %v1661 = vrot.slane %v1649, 5
        %v1662 = vrot.slane %v1650, 5
        %v1663 = vrot.slane %v1649, 6
        %v1664 = vrot.slane %v1650, 6
        %v1665 = vrot.slane %v1649, 7
        %v1666 = vrot.slane %v1650, 7
        %v1683 = vsel %vm320, %v1653, 0.0
        %v1684 = vsel %vm321, %v1654, 0.0
        %v1685 = vsel %vm320, %v1655, 0.0
        %v1686 = vsel %vm321, %v1656, 0.0
        %v1687 = vsel %vm320, %v1657, 0.0
        %v1688 = vsel %vm321, %v1658, 0.0
        %v1689 = vsel %vm320, %v1659, 0.0
        %v1690 = vsel %vm321, %v1660, 0.0
        %v1691 = vsel %vm320, %v1661, 0.0
        %v1692 = vsel %vm321, %v1662, 0.0
        %v1693 = vsel %vm320, %v1663, 0.0
        %v1694 = vsel %vm321, %v1664, 0.0
        %v1695 = vsel %vm320, %v1665, 0.0
        %v1696 = vsel %vm321, %v1666, 0.0
        %v1697 = vsel %vm320, %v1649, 0.0
        %v1698 = vsel %vm321, %v1650, 0.0
        %v1715 = vrot.slane %v1307, 7
        %v1716 = vsel %vm772, %v1715, %v1305
        %v1717 = vrot.slane %v1309, 6
        %v1718 = vsel %vm775, %v1717, %v1716
        %v1719 = vrot.slane %v1311, 5
        %v1720 = vsel %vm778, %v1719, %v1718
        %v1721 = vrot.slane %v1313, 4
        %v1722 = vsel %vm781, %v1721, %v1720
        %v1723 = vrot.slane %v1315, 3
        %v1724 = vsel %vm784, %v1723, %v1722
        %v1725 = vrot.slane %v1317, 2
        %v1726 = vsel %vm787, %v1725, %v1724
        %v1727 = vrot.slane %v1319, 1
        %v1728 = vsel %vm790, %v1727, %v1726
        %v1729 = vrot.slane %v1308, 7
        %v1730 = vsel %vm772, %v1729, %v1306
        %v1731 = vrot.slane %v1310, 6
        %v1732 = vsel %vm775, %v1731, %v1730
        %v1733 = vrot.slane %v1312, 5
        %v1734 = vsel %vm778, %v1733, %v1732
        %v1735 = vrot.slane %v1314, 4
        %v1736 = vsel %vm781, %v1735, %v1734
        %v1737 = vrot.slane %v1316, 3
        %v1738 = vsel %vm784, %v1737, %v1736
        %v1739 = vrot.slane %v1318, 2
        %v1740 = vsel %vm787, %v1739, %v1738
        %v1741 = vrot.slane %v1320, 1
        %v1742 = vsel %vm790, %v1741, %v1740
        %v1761 = vrot.slane %v1359, 1
        %v1762 = vsel %vm772, %v1361, %v1761
        %v1763 = vrot.slane %v1363, 7
        %v1764 = vsel %vm775, %v1763, %v1762
        %v1765 = vrot.slane %v1365, 6
        %v1766 = vsel %vm778, %v1765, %v1764
        %v1767 = vrot.slane %v1367, 5
        %v1768 = vsel %vm781, %v1767, %v1766
        %v1769 = vrot.slane %v1369, 4
        %v1770 = vsel %vm784, %v1769, %v1768
        %v1771 = vrot.slane %v1371, 3
        %v1772 = vsel %vm787, %v1771, %v1770
        %v1773 = vrot.slane %v1373, 2
        %v1774 = vsel %vm790, %v1773, %v1772
        %v1775 = vrot.slane %v1360, 1
        %v1776 = vsel %vm772, %v1362, %v1775
        %v1777 = vrot.slane %v1364, 7
        %v1778 = vsel %vm775, %v1777, %v1776
        %v1779 = vrot.slane %v1366, 6
        %v1780 = vsel %vm778, %v1779, %v1778
        %v1781 = vrot.slane %v1368, 5
        %v1782 = vsel %vm781, %v1781, %v1780
        %v1783 = vrot.slane %v1370, 4
        %v1784 = vsel %vm784, %v1783, %v1782
        %v1785 = vrot.slane %v1372, 3
        %v1786 = vsel %vm787, %v1785, %v1784
        %v1787 = vrot.slane %v1374, 2
        %v1788 = vsel %vm790, %v1787, %v1786
        %v1807 = vrot.slane %v1413, 2
        %v1808 = vrot.slane %v1415, 1
        %v1809 = vsel %vm772, %v1808, %v1807
        %v1810 = vsel %vm775, %v1417, %v1809
        %v1811 = vrot.slane %v1419, 7
        %v1812 = vsel %vm778, %v1811, %v1810
        %v1813 = vrot.slane %v1421, 6
        %v1814 = vsel %vm781, %v1813, %v1812
        %v1815 = vrot.slane %v1423, 5
        %v1816 = vsel %vm784, %v1815, %v1814
        %v1817 = vrot.slane %v1425, 4
        %v1818 = vsel %vm787, %v1817, %v1816
        %v1819 = vrot.slane %v1427, 3
        %v1820 = vsel %vm790, %v1819, %v1818
        %v1821 = vrot.slane %v1414, 2
        %v1822 = vrot.slane %v1416, 1
        %v1823 = vsel %vm772, %v1822, %v1821
        %v1824 = vsel %vm775, %v1418, %v1823
        %v1825 = vrot.slane %v1420, 7
        %v1826 = vsel %vm778, %v1825, %v1824
        %v1827 = vrot.slane %v1422, 6
        %v1828 = vsel %vm781, %v1827, %v1826
        %v1829 = vrot.slane %v1424, 5
        %v1830 = vsel %vm784, %v1829, %v1828
        %v1831 = vrot.slane %v1426, 4
        %v1832 = vsel %vm787, %v1831, %v1830
        %v1833 = vrot.slane %v1428, 3
        %v1834 = vsel %vm790, %v1833, %v1832
        %v1853 = vrot.slane %v1467, 3
        %v1854 = vrot.slane %v1469, 2
        %v1855 = vsel %vm772, %v1854, %v1853
        %v1856 = vrot.slane %v1471, 1
        %v1857 = vsel %vm775, %v1856, %v1855
        %v1858 = vsel %vm778, %v1473, %v1857
        %v1859 = vrot.slane %v1475, 7
        %v1860 = vsel %vm781, %v1859, %v1858
        %v1861 = vrot.slane %v1477, 6
        %v1862 = vsel %vm784, %v1861, %v1860
        %v1863 = vrot.slane %v1479, 5
        %v1864 = vsel %vm787, %v1863, %v1862
        %v1865 = vrot.slane %v1481, 4
        %v1866 = vsel %vm790, %v1865, %v1864
        %v1867 = vrot.slane %v1468, 3
        %v1868 = vrot.slane %v1470, 2
        %v1869 = vsel %vm772, %v1868, %v1867
        %v1870 = vrot.slane %v1472, 1
        %v1871 = vsel %vm775, %v1870, %v1869
        %v1872 = vsel %vm778, %v1474, %v1871
        %v1873 = vrot.slane %v1476, 7
        %v1874 = vsel %vm781, %v1873, %v1872
        %v1875 = vrot.slane %v1478, 6
        %v1876 = vsel %vm784, %v1875, %v1874
        %v1877 = vrot.slane %v1480, 5
        %v1878 = vsel %vm787, %v1877, %v1876
        %v1879 = vrot.slane %v1482, 4
        %v1880 = vsel %vm790, %v1879, %v1878
        %v1899 = vrot.slane %v1521, 4
        %v1900 = vrot.slane %v1523, 3
        %v1901 = vsel %vm772, %v1900, %v1899
        %v1902 = vrot.slane %v1525, 2
        %v1903 = vsel %vm775, %v1902, %v1901
        %v1904 = vrot.slane %v1527, 1
        %v1905 = vsel %vm778, %v1904, %v1903
        %v1906 = vsel %vm781, %v1529, %v1905
        %v1907 = vrot.slane %v1531, 7
        %v1908 = vsel %vm784, %v1907, %v1906
        %v1909 = vrot.slane %v1533, 6
        %v1910 = vsel %vm787, %v1909, %v1908
        %v1911 = vrot.slane %v1535, 5
        %v1912 = vsel %vm790, %v1911, %v1910
        %v1913 = vrot.slane %v1522, 4
        %v1914 = vrot.slane %v1524, 3
        %v1915 = vsel %vm772, %v1914, %v1913
        %v1916 = vrot.slane %v1526, 2
        %v1917 = vsel %vm775, %v1916, %v1915
        %v1918 = vrot.slane %v1528, 1
        %v1919 = vsel %vm778, %v1918, %v1917
        %v1920 = vsel %vm781, %v1530, %v1919
        %v1921 = vrot.slane %v1532, 7
        %v1922 = vsel %vm784, %v1921, %v1920
        %v1923 = vrot.slane %v1534, 6
        %v1924 = vsel %vm787, %v1923, %v1922
        %v1925 = vrot.slane %v1536, 5
        %v1926 = vsel %vm790, %v1925, %v1924
        %v1945 = vrot.slane %v1575, 5
        %v1946 = vrot.slane %v1577, 4
        %v1947 = vsel %vm772, %v1946, %v1945
        %v1948 = vrot.slane %v1579, 3
        %v1949 = vsel %vm775, %v1948, %v1947
        %v1950 = vrot.slane %v1581, 2
        %v1951 = vsel %vm778, %v1950, %v1949
        %v1952 = vrot.slane %v1583, 1
        %v1953 = vsel %vm781, %v1952, %v1951
        %v1954 = vsel %vm784, %v1585, %v1953
        %v1955 = vrot.slane %v1587, 7
        %v1956 = vsel %vm787, %v1955, %v1954
        %v1957 = vrot.slane %v1589, 6
        %v1958 = vsel %vm790, %v1957, %v1956
        %v1959 = vrot.slane %v1576, 5
        %v1960 = vrot.slane %v1578, 4
        %v1961 = vsel %vm772, %v1960, %v1959
        %v1962 = vrot.slane %v1580, 3
        %v1963 = vsel %vm775, %v1962, %v1961
        %v1964 = vrot.slane %v1582, 2
        %v1965 = vsel %vm778, %v1964, %v1963
        %v1966 = vrot.slane %v1584, 1
        %v1967 = vsel %vm781, %v1966, %v1965
        %v1968 = vsel %vm784, %v1586, %v1967
        %v1969 = vrot.slane %v1588, 7
        %v1970 = vsel %vm787, %v1969, %v1968
        %v1971 = vrot.slane %v1590, 6
        %v1972 = vsel %vm790, %v1971, %v1970
        %v1991 = vrot.slane %v1629, 6
        %v1992 = vrot.slane %v1631, 5
        %v1993 = vsel %vm772, %v1992, %v1991
        %v1994 = vrot.slane %v1633, 4
        %v1995 = vsel %vm775, %v1994, %v1993
        %v1996 = vrot.slane %v1635, 3
        %v1997 = vsel %vm778, %v1996, %v1995
        %v1998 = vrot.slane %v1637, 2
        %v1999 = vsel %vm781, %v1998, %v1997
        %v2000 = vrot.slane %v1639, 1
        %v2001 = vsel %vm784, %v2000, %v1999
        %v2002 = vsel %vm787, %v1641, %v2001
        %v2003 = vrot.slane %v1643, 7
        %v2004 = vsel %vm790, %v2003, %v2002
        %v2005 = vrot.slane %v1630, 6
        %v2006 = vrot.slane %v1632, 5
        %v2007 = vsel %vm772, %v2006, %v2005
        %v2008 = vrot.slane %v1634, 4
        %v2009 = vsel %vm775, %v2008, %v2007
        %v2010 = vrot.slane %v1636, 3
        %v2011 = vsel %vm778, %v2010, %v2009
        %v2012 = vrot.slane %v1638, 2
        %v2013 = vsel %vm781, %v2012, %v2011
        %v2014 = vrot.slane %v1640, 1
        %v2015 = vsel %vm784, %v2014, %v2013
        %v2016 = vsel %vm787, %v1642, %v2015
        %v2017 = vrot.slane %v1644, 7
        %v2018 = vsel %vm790, %v2017, %v2016
        %v2037 = vrot.slane %v1683, 7
        %v2038 = vrot.slane %v1685, 6
        %v2039 = vsel %vm772, %v2038, %v2037
        %v2040 = vrot.slane %v1687, 5
        %v2041 = vsel %vm775, %v2040, %v2039
        %v2042 = vrot.slane %v1689, 4
        %v2043 = vsel %vm778, %v2042, %v2041
        %v2044 = vrot.slane %v1691, 3
        %v2045 = vsel %vm781, %v2044, %v2043
        %v2046 = vrot.slane %v1693, 2
        %v2047 = vsel %vm784, %v2046, %v2045
        %v2048 = vrot.slane %v1695, 1
        %v2049 = vsel %vm787, %v2048, %v2047
        %v2050 = vsel %vm790, %v1697, %v2049
        %v2051 = vrot.slane %v1684, 7
        %v2052 = vrot.slane %v1686, 6
        %v2053 = vsel %vm772, %v2052, %v2051
        %v2054 = vrot.slane %v1688, 5
        %v2055 = vsel %vm775, %v2054, %v2053
        %v2056 = vrot.slane %v1690, 4
        %v2057 = vsel %vm778, %v2056, %v2055
        %v2058 = vrot.slane %v1692, 3
        %v2059 = vsel %vm781, %v2058, %v2057
        %v2060 = vrot.slane %v1694, 2
        %v2061 = vsel %vm784, %v2060, %v2059
        %v2062 = vrot.slane %v1696, 1
        %v2063 = vsel %vm787, %v2062, %v2061
        %v2064 = vsel %vm790, %v1698, %v2063
        %2068 = vset.pattern.permute.xlu0 0
        %2069 = vperm.xlu0 %2068, %v308
        %v2070 = vpop.permute.xlu0 %2069
        %v2073 = vsel %vm1135, %v306, 0
        %2075 = vmatpush.msra.mxu0 0.0
        %2076 = vmatpush.msra.mxu0 0.0
        %2077 = vmatpush.msra.mxu0 0.0
        %2078 = vmatpush.msra.mxu0 0.0
        %2079 = vmatpush.msra.mxu0 0.0
        %2080 = vmatpush.msra.mxu0 0.0
        %2081 = vmatpush.msra.mxu0 0.0
        %2082 = vmatpush.msra.mxu0 %v2050
        %2083 = vmatpush.msra.mxu0 %v2004
        %2084 = vmatpush.msra.mxu0 %v1958
        %2085 = vmatpush.msra.mxu0 %v1912
        %2086 = vmatpush.msra.mxu0 %v1265
        %2087 = vmatpush.msra.mxu0 %v1866
        %2088 = vmatpush.msra.mxu0 %v1820
        %2089 = vmatpush.msra.mxu0 %v1774
        %2090 = vmatpush.msra.mxu0 %v1728
        %2091 = vmatmul.f32.gmra.mxu0 %v2073
        %v2092 = vpop.f32.mrf.mxu0
        %v2093 = vadd.f32 %v2070, %v2092
        %2094 = vdwg.mxu0
        %2095 = vmatpush.msra.mxu0 0.0
        %2096 = vmatpush.msra.mxu0 0.0
        %2097 = vmatpush.msra.mxu0 0.0
        %2098 = vmatpush.msra.mxu0 0.0
        %2099 = vmatpush.msra.mxu0 0.0
        %2100 = vmatpush.msra.mxu0 0.0
        %2101 = vmatpush.msra.mxu0 0.0
        %2102 = vmatpush.msra.mxu0 %v2064
        %2103 = vmatpush.msra.mxu0 %v2018
        %2104 = vmatpush.msra.mxu0 %v1972
        %2105 = vmatpush.msra.mxu0 %v1926
        %2106 = vmatpush.msra.mxu0 %v1266
        %2107 = vmatpush.msra.mxu0 %v1880
        %2108 = vmatpush.msra.mxu0 %v1834
        %2109 = vmatpush.msra.mxu0 %v1788
        %2110 = vmatpush.msra.mxu0 %v1742
        %2111 = vmatmul.f32.gmra.mxu0 %v2073
        %v2112 = vpop.f32.mrf.mxu0
        %v2113 = vadd.f32 %v2070, %v2112
        %2114 = vdwg.mxu0
        %2115 = vst [vmem:[%s298] sm:$0xff] %v2093
        %2116 = vst [vmem:[%s298 + $0x8] sm:$0xff] %v2113
        %s2117 = sand.u32 %s163, 1
        %s2118 = scalar_lea.sflag [#allocation4], %s2117
        %s2119 = sand.u32 %s163, 1
        %s2120 = smul.addr %s2119, 16
        %s2121 = scalar_lea.vmem [#allocation8], %s2120
        // Predicated region
        $region57: #{tpu_custom_call.1} parent=43 // pred_check
          %p2122 = pneg %p173
        $region58: #{tpu_custom_call.1} parent=43 // pred_check_branch
          %2124 = sbr.rel (%p2122) target = $region60
        $region59: #{tpu_custom_call.1} parent=43 // pred_region
          %2126 = vsyncadd %s2118, 0
          %s2127 = smul.addr %s24, 2
          %s2128 = smul.addr %s2127, 8
          %s2129 = scalar_lea.hbm %s6, %s2128
          %s2131 = sshll.u32 %s2121, 4
          %s2132 = int_to_ptr.vmem [resolvable:$true] %s2131
          %s2133 = sshll.u32 %s2129, 4
          %s2134 = int_to_ptr.hbm [resolvable:$true] %s2133
          %2136 = dma.vmem_to_hbm [thread:$0]  %s2132, 256, %s2134, %s2118
        $region60: #{tpu_custom_call.1} parent=43 // pred_fallthru
          _
      $region44: #{tpu_custom_call.1} parent=5 // pred_fallthru
        _
      %p2137 = scmp.le.s32.totalorder 2, %s19
      // Predicated region
      $region61: #{tpu_custom_call.1} parent=5 // pred_check
        %p2138 = pneg %p2137
      $region62: #{tpu_custom_call.1} parent=5 // pred_check_branch
        %2140 = sbr.rel (%p2138) target = $region64
      $region63: #{tpu_custom_call.1} parent=5 // pred_region
        %s2141 = ssub.s32 %s19, 2
        // Predicated region
        $region65: #{tpu_custom_call.1} parent=63 // pred_check
          %p2142 = pneg %p179
        $region66: #{tpu_custom_call.1} parent=63 // pred_check_branch
          %2144 = sbr.rel (%p2142) target = $region68
        $region67: #{tpu_custom_call.1} parent=63 // pred_region
          %s2145 = sand.u32 %s164, 1
          %s2146 = scalar_lea.sflag [#allocation4], %s2145
          %s2147 = sand.u32 %s164, 1
          %s2148 = smul.addr %s2147, 16
          %s2149 = scalar_lea.vmem [#allocation8], %s2148
          %2151 = dma.done %s2146, 256
        $region68: #{tpu_custom_call.1} parent=63 // pred_fallthru
          _
      $region64: #{tpu_custom_call.1} parent=5 // pred_fallthru
        _
    $region6: #{tpu_custom_call.1} parent=1 // loop_footer
      %s23 = sadd.s32 1, %s19
    $region7: #{tpu_custom_call.1} parent=1 // loop_footer_branch
      %18 = sbr.rel target = $region3
    $region8: #{tpu_custom_call.1} parent=1 // loop_exit
      _
    %2152 = vsyncpa [#allocation3], 1
    %s2153 = scalar_lea.sflag [#allocation3], 1
    %2154 = vsyncpa %s2153, 1
    %2155 = vsyncpa [#allocation6], 1
    %2156 = vsyncpa [#allocation4], 1
    %s2157 = scalar_lea.sflag [#allocation4], 1
    %2158 = vsyncpa %s2157, 1

</llo_original>
